<compile_context>
chip_gen: v6e
topology: v6e:2x2x1
jax: 0.10.0
libtpu: 0.0.40
codegen_flags: <defaults>
</compile_context>

<pallas_src>
import functools
import math

import jax
import jax.numpy as jnp
from jax.experimental import pallas as pl
from jax.experimental.pallas import tpu as pltpu


# ----------------------------- Pallas kernel --------------------------------


def _modified_mlp_kernel(x_ref, *refs, n_gate):
    """Fused Modified_MLP forward for one (tile_m, d_in) row-block.

    refs = (w1, b1, w2, b2,
            wg_0, bg_0, ..., wg_{n_gate-1}, bg_{n_gate-1},
            w_out, b_out,
            o_ref)
    All weight/bias refs are full VMEM-resident blocks.
    """
    o_ref = refs[-1]
    w1_ref, b1_ref, w2_ref, b2_ref = refs[0:4]
    gate_refs = refs[4:4 + 2 * n_gate]
    wo_ref, bo_ref = refs[4 + 2 * n_gate], refs[5 + 2 * n_gate]

    x = x_ref[...]  # (tile_m, d_in) f32

    # TODO(synk): activation chosen as tanh — the `_get_act(activation)`
    # mapping is not part of the provided spec (tanh is the standard choice
    # for Modified_MLP / PINN-style nets).
    u = jnp.tanh(
        jnp.dot(x, w1_ref[...], preferred_element_type=jnp.float32) + b1_ref[...])
    v = jnp.tanh(
        jnp.dot(x, w2_ref[...], preferred_element_type=jnp.float32) + b2_ref[...])

    # Static unroll over the (small) number of gated layers.  `h` starts as
    # the raw input (d_in cols) and becomes (hidden) cols after the first
    # gate layer, exactly as in the PyTorch forward.
    h = x
    for i in range(n_gate):
        wg = gate_refs[2 * i][...]
        bg = gate_refs[2 * i + 1][...]
        t = jnp.dot(h, wg, preferred_element_type=jnp.float32) + bg
        z = 1.0 / (1.0 + jnp.exp(-t))          # sigmoid (exp on EUP)
        h = z * u + (1.0 - z) * v

    # Final (un-activated) linear.  NOTE: for v6e/v7x a bf16 cast of
    # `h`/weights right before the dots (keeping f32 accumulation) is a
    # drop-in throughput upgrade; kept f32 here for tight numerical checks.
    out = jnp.dot(h, wo_ref[...], preferred_element_type=jnp.float32) + bo_ref[...]
    o_ref[...] = out.astype(o_ref.dtype)


def _const_spec(shape):
    """Full-array block, same block for every grid step (VMEM resident)."""
    nd = len(shape)
    return pl.BlockSpec(shape, lambda i: (0,) * nd)


def modified_mlp_forward(x, params, *, tile_m=128):
    """x: (M, d_in) f32 -> (M, d_out) f32, fused Modified_MLP forward."""
    M, d_in = x.shape
    w1, b1 = params["linear1"]
    w2, b2 = params["linear2"]
    gates = params["gates"]                      # list of (W, b)
    w_out, b_out = params["out"]
    d_out = w_out.shape[1]
    n_gate = len(gates)

    # Pad rows up to a multiple of tile_m (sublane-aligned, >= 8).
    m_pad = -(-M // tile_m) * tile_m
    if m_pad != M:
        x = jnp.pad(x, ((0, m_pad - M), (0, 0)))

    flat_weights = [w1, b1, w2, b2]
    for (wg, bg) in gates:
        flat_weights += [wg, bg]
    flat_weights += [w_out, b_out]

    in_specs = [pl.BlockSpec((tile_m, d_in), lambda i: (i, 0))]
    in_specs += [_const_spec(a.shape) for a in flat_weights]

    out = pl.pallas_call(
        functools.partial(_modified_mlp_kernel, n_gate=n_gate),
        grid=(m_pad // tile_m,),
        in_specs=in_specs,
        out_specs=pl.BlockSpec((tile_m, d_out), lambda i: (i, 0)),
        out_shape=jax.ShapeDtypeStruct((m_pad, d_out), jnp.float32),
        compiler_params=pltpu.CompilerParams(
            dimension_semantics=("parallel",)),   # split rows across TCs (v7x)
    )(x, *flat_weights)

    return out[:M]


# ----------------------------- Parameters ------------------------------------


def _xavier_normal(key, fan_in, fan_out):
    # torch.nn.init.xavier_normal_: std = sqrt(2 / (fan_in + fan_out))
    std = math.sqrt(2.0 / (fan_in + fan_out))
    return std * jax.random.normal(key, (fan_in, fan_out), dtype=jnp.float32)


def init_params(key, layer_sizes):
    """layer_sizes = [d_in, H, H, ..., H, d_out] (equal hidden widths, as the
    gating formula in Modified_MLP.forward requires)."""
    d_in, hidden = layer_sizes[0], layer_sizes[1]
    n_linears = len(layer_sizes) - 1
    keys = jax.random.split(key, n_linears + 2)

    params = {
        "linear1": (_xavier_normal(keys[0], d_in, hidden),
                    jnp.zeros((1, hidden), jnp.float32)),
        "linear2": (_xavier_normal(keys[1], d_in, hidden),
                    jnp.zeros((1, hidden), jnp.float32)),
    }
    gates = []
    for i in range(n_linears - 1):               # linears[:-1]
        fi, fo = layer_sizes[i], layer_sizes[i + 1]
        gates.append((_xavier_normal(keys[2 + i], fi, fo),
                      jnp.zeros((1, fo), jnp.float32)))
    params["gates"] = gates
    fi, fo = layer_sizes[-2], layer_sizes[-1]    # linears[-1]
    params["out"] = (_xavier_normal(keys[2 + n_linears - 1], fi, fo),
                     jnp.zeros((1, fo), jnp.float32))
    return params


# ----------------------------- Reference --------------------------------------


def reference_forward(x, params):
    """Pure-JAX mirror of the PyTorch Modified_MLP.forward."""
    w1, b1 = params["linear1"]
    w2, b2 = params["linear2"]
    u = jnp.tanh(x @ w1 + b1)
    v = jnp.tanh(x @ w2 + b2)
    h = x
    for (wg, bg) in params["gates"]:
        z = jax.nn.sigmoid(h @ wg + bg)
        h = z * u + (1.0 - z) * v
    w_out, b_out = params["out"]
    return h @ w_out + b_out


# --------------------------------- Main ----------------------------------------


if __name__ == "__main__":
    # Small but representative shapes: d_in=4, hidden=128 (lane-aligned),
    # three gated layers, d_out=2, batch=200 (exercises row padding/tiling).
    layer_sizes = [4, 128, 128, 128, 2]
    batch = 200
    tile_m = 64

    key = jax.random.PRNGKey(0)
    k_params, k_x = jax.random.split(key)
    params = init_params(k_params, layer_sizes)
    x = jax.random.normal(k_x, (batch, layer_sizes[0]), jnp.float32)

    fwd = jax.jit(functools.partial(modified_mlp_forward, tile_m=tile_m))
    out = jax.block_until_ready(fwd(x, params))

    ref = reference_forward(x, params)
    assert out.shape == (batch, layer_sizes[-1]), out.shape
    max_err = float(jnp.max(jnp.abs(out - ref)))
    assert jnp.allclose(out, ref, atol=1e-4, rtol=1e-4), f"mismatch {max_err}"

    print("KERNEL_OK")
</pallas_src>

<mosaic_0001>
module attributes {stable_mosaic.version = 11 : i64} {
  func.func @_modified_mlp_kernel(%arg0: i32, %arg1: memref<64x4xf32, #tpu.memory_space<vmem>>, %arg2: memref<4x128xf32, #tpu.memory_space<vmem>>, %arg3: memref<1x128xf32, #tpu.memory_space<vmem>>, %arg4: memref<4x128xf32, #tpu.memory_space<vmem>>, %arg5: memref<1x128xf32, #tpu.memory_space<vmem>>, %arg6: memref<4x128xf32, #tpu.memory_space<vmem>>, %arg7: memref<1x128xf32, #tpu.memory_space<vmem>>, %arg8: memref<128x128xf32, #tpu.memory_space<vmem>>, %arg9: memref<1x128xf32, #tpu.memory_space<vmem>>, %arg10: memref<128x128xf32, #tpu.memory_space<vmem>>, %arg11: memref<1x128xf32, #tpu.memory_space<vmem>>, %arg12: memref<128x2xf32, #tpu.memory_space<vmem>>, %arg13: memref<1x2xf32, #tpu.memory_space<vmem>>, %arg14: memref<64x2xf32, #tpu.memory_space<vmem>>) attributes {dimension_semantics = [#tpu.dimension_semantics<parallel>], iteration_bounds = array<i64: 4>, scalar_prefetch = 0 : i64, scratch_operands = 0 : i64, tpu.core_type = #tpu.core_type<tc>, window_params = [{transform_indices = @transform_0, window_bounds = array<i64: 64, 4>}, {pipeline_mode = #tpu.pipeline_mode<synchronous>, transform_indices = @transform_1, window_bounds = array<i64: 4, 128>}, {pipeline_mode = #tpu.pipeline_mode<synchronous>, transform_indices = @transform_2, window_bounds = array<i64: 1, 128>}, {pipeline_mode = #tpu.pipeline_mode<synchronous>, transform_indices = @transform_3, window_bounds = array<i64: 4, 128>}, {pipeline_mode = #tpu.pipeline_mode<synchronous>, transform_indices = @transform_4, window_bounds = array<i64: 1, 128>}, {pipeline_mode = #tpu.pipeline_mode<synchronous>, transform_indices = @transform_5, window_bounds = array<i64: 4, 128>}, {pipeline_mode = #tpu.pipeline_mode<synchronous>, transform_indices = @transform_6, window_bounds = array<i64: 1, 128>}, {pipeline_mode = #tpu.pipeline_mode<synchronous>, transform_indices = @transform_7, window_bounds = array<i64: 128, 128>}, {pipeline_mode = #tpu.pipeline_mode<synchronous>, transform_indices = @transform_8, window_bounds = array<i64: 1, 128>}, {pipeline_mode = #tpu.pipeline_mode<synchronous>, transform_indices = @transform_9, window_bounds = array<i64: 128, 128>}, {pipeline_mode = #tpu.pipeline_mode<synchronous>, transform_indices = @transform_10, window_bounds = array<i64: 1, 128>}, {pipeline_mode = #tpu.pipeline_mode<synchronous>, transform_indices = @transform_11, window_bounds = array<i64: 128, 2>}, {pipeline_mode = #tpu.pipeline_mode<synchronous>, transform_indices = @transform_12, window_bounds = array<i64: 1, 2>}, {transform_indices = @transform_13, window_bounds = array<i64: 64, 2>}]} {
    %c0 = arith.constant 0 : index
    %c0_0 = arith.constant 0 : index
    %0 = vector.load %arg1[%c0, %c0_0] : memref<64x4xf32, #tpu.memory_space<vmem>>, vector<64x4xf32>
    %c0_1 = arith.constant 0 : index
    %c0_2 = arith.constant 0 : index
    %1 = vector.load %arg2[%c0_1, %c0_2] : memref<4x128xf32, #tpu.memory_space<vmem>>, vector<4x128xf32>
    %cst = arith.constant dense<0.000000e+00> : vector<64x128xf32>
    %2 = tpu.matmul %0, %1, %cst {dimension_numbers = #tpu.dot_dimension_numbers<[1], [0], [0], [1], [0, 0, 1, 1], [], []>} : vector<64x4xf32>, vector<4x128xf32>, vector<64x128xf32> -> vector<64x128xf32>
    %c0_3 = arith.constant 0 : index
    %c0_4 = arith.constant 0 : index
    %3 = vector.load %arg3[%c0_3, %c0_4] : memref<1x128xf32, #tpu.memory_space<vmem>>, vector<1x128xf32>
    %4 = vector.broadcast %3 : vector<1x128xf32> to vector<64x128xf32>
    %5 = arith.addf %2, %4 : vector<64x128xf32>
    %6 = math.tanh %5 : vector<64x128xf32>
    %c0_5 = arith.constant 0 : index
    %c0_6 = arith.constant 0 : index
    %7 = vector.load %arg4[%c0_5, %c0_6] : memref<4x128xf32, #tpu.memory_space<vmem>>, vector<4x128xf32>
    %cst_7 = arith.constant dense<0.000000e+00> : vector<64x128xf32>
    %8 = tpu.matmul %0, %7, %cst_7 {dimension_numbers = #tpu.dot_dimension_numbers<[1], [0], [0], [1], [0, 0, 1, 1], [], []>} : vector<64x4xf32>, vector<4x128xf32>, vector<64x128xf32> -> vector<64x128xf32>
    %c0_8 = arith.constant 0 : index
    %c0_9 = arith.constant 0 : index
    %9 = vector.load %arg5[%c0_8, %c0_9] : memref<1x128xf32, #tpu.memory_space<vmem>>, vector<1x128xf32>
    %10 = vector.broadcast %9 : vector<1x128xf32> to vector<64x128xf32>
    %11 = arith.addf %8, %10 : vector<64x128xf32>
    %12 = math.tanh %11 : vector<64x128xf32>
    %c0_10 = arith.constant 0 : index
    %c0_11 = arith.constant 0 : index
    %13 = vector.load %arg6[%c0_10, %c0_11] : memref<4x128xf32, #tpu.memory_space<vmem>>, vector<4x128xf32>
    %c0_12 = arith.constant 0 : index
    %c0_13 = arith.constant 0 : index
    %14 = vector.load %arg7[%c0_12, %c0_13] : memref<1x128xf32, #tpu.memory_space<vmem>>, vector<1x128xf32>
    %cst_14 = arith.constant dense<0.000000e+00> : vector<64x128xf32>
    %15 = tpu.matmul %0, %13, %cst_14 {dimension_numbers = #tpu.dot_dimension_numbers<[1], [0], [0], [1], [0, 0, 1, 1], [], []>} : vector<64x4xf32>, vector<4x128xf32>, vector<64x128xf32> -> vector<64x128xf32>
    %16 = vector.broadcast %14 : vector<1x128xf32> to vector<64x128xf32>
    %17 = arith.addf %15, %16 : vector<64x128xf32>
    %cst_15 = arith.constant 0.000000e+00 : f32
    %18 = vector.broadcast %cst_15 : f32 to vector<64x128xf32>
    %19 = arith.subf %18, %17 : vector<64x128xf32>
    %20 = math.exp %19 : vector<64x128xf32>
    %cst_16 = arith.constant 1.000000e+00 : f32
    %21 = vector.broadcast %cst_16 : f32 to vector<64x128xf32>
    %22 = arith.addf %21, %20 : vector<64x128xf32>
    %cst_17 = arith.constant 1.000000e+00 : f32
    %23 = vector.broadcast %cst_17 : f32 to vector<64x128xf32>
    %24 = arith.divf %23, %22 : vector<64x128xf32>
    %25 = arith.mulf %24, %6 : vector<64x128xf32>
    %cst_18 = arith.constant 1.000000e+00 : f32
    %26 = vector.broadcast %cst_18 : f32 to vector<64x128xf32>
    %27 = arith.subf %26, %24 : vector<64x128xf32>
    %28 = arith.mulf %27, %12 : vector<64x128xf32>
    %29 = arith.addf %25, %28 : vector<64x128xf32>
    %c0_19 = arith.constant 0 : index
    %c0_20 = arith.constant 0 : index
    %30 = vector.load %arg8[%c0_19, %c0_20] : memref<128x128xf32, #tpu.memory_space<vmem>>, vector<128x128xf32>
    %c0_21 = arith.constant 0 : index
    %c0_22 = arith.constant 0 : index
    %31 = vector.load %arg9[%c0_21, %c0_22] : memref<1x128xf32, #tpu.memory_space<vmem>>, vector<1x128xf32>
    %cst_23 = arith.constant dense<0.000000e+00> : vector<64x128xf32>
    %32 = tpu.matmul %29, %30, %cst_23 {dimension_numbers = #tpu.dot_dimension_numbers<[1], [0], [0], [1], [0, 0, 1, 1], [], []>} : vector<64x128xf32>, vector<128x128xf32>, vector<64x128xf32> -> vector<64x128xf32>
    %33 = vector.broadcast %31 : vector<1x128xf32> to vector<64x128xf32>
    %34 = arith.addf %32, %33 : vector<64x128xf32>
    %cst_24 = arith.constant 0.000000e+00 : f32
    %35 = vector.broadcast %cst_24 : f32 to vector<64x128xf32>
    %36 = arith.subf %35, %34 : vector<64x128xf32>
    %37 = math.exp %36 : vector<64x128xf32>
    %cst_25 = arith.constant 1.000000e+00 : f32
    %38 = vector.broadcast %cst_25 : f32 to vector<64x128xf32>
    %39 = arith.addf %38, %37 : vector<64x128xf32>
    %cst_26 = arith.constant 1.000000e+00 : f32
    %40 = vector.broadcast %cst_26 : f32 to vector<64x128xf32>
    %41 = arith.divf %40, %39 : vector<64x128xf32>
    %42 = arith.mulf %41, %6 : vector<64x128xf32>
    %cst_27 = arith.constant 1.000000e+00 : f32
    %43 = vector.broadcast %cst_27 : f32 to vector<64x128xf32>
    %44 = arith.subf %43, %41 : vector<64x128xf32>
    %45 = arith.mulf %44, %12 : vector<64x128xf32>
    %46 = arith.addf %42, %45 : vector<64x128xf32>
    %c0_28 = arith.constant 0 : index
    %c0_29 = arith.constant 0 : index
    %47 = vector.load %arg10[%c0_28, %c0_29] : memref<128x128xf32, #tpu.memory_space<vmem>>, vector<128x128xf32>
    %c0_30 = arith.constant 0 : index
    %c0_31 = arith.constant 0 : index
    %48 = vector.load %arg11[%c0_30, %c0_31] : memref<1x128xf32, #tpu.memory_space<vmem>>, vector<1x128xf32>
    %cst_32 = arith.constant dense<0.000000e+00> : vector<64x128xf32>
    %49 = tpu.matmul %46, %47, %cst_32 {dimension_numbers = #tpu.dot_dimension_numbers<[1], [0], [0], [1], [0, 0, 1, 1], [], []>} : vector<64x128xf32>, vector<128x128xf32>, vector<64x128xf32> -> vector<64x128xf32>
    %50 = vector.broadcast %48 : vector<1x128xf32> to vector<64x128xf32>
    %51 = arith.addf %49, %50 : vector<64x128xf32>
    %cst_33 = arith.constant 0.000000e+00 : f32
    %52 = vector.broadcast %cst_33 : f32 to vector<64x128xf32>
    %53 = arith.subf %52, %51 : vector<64x128xf32>
    %54 = math.exp %53 : vector<64x128xf32>
    %cst_34 = arith.constant 1.000000e+00 : f32
    %55 = vector.broadcast %cst_34 : f32 to vector<64x128xf32>
    %56 = arith.addf %55, %54 : vector<64x128xf32>
    %cst_35 = arith.constant 1.000000e+00 : f32
    %57 = vector.broadcast %cst_35 : f32 to vector<64x128xf32>
    %58 = arith.divf %57, %56 : vector<64x128xf32>
    %59 = arith.mulf %58, %6 : vector<64x128xf32>
    %cst_36 = arith.constant 1.000000e+00 : f32
    %60 = vector.broadcast %cst_36 : f32 to vector<64x128xf32>
    %61 = arith.subf %60, %58 : vector<64x128xf32>
    %62 = arith.mulf %61, %12 : vector<64x128xf32>
    %63 = arith.addf %59, %62 : vector<64x128xf32>
    %c0_37 = arith.constant 0 : index
    %c0_38 = arith.constant 0 : index
    %64 = vector.load %arg12[%c0_37, %c0_38] : memref<128x2xf32, #tpu.memory_space<vmem>>, vector<128x2xf32>
    %cst_39 = arith.constant dense<0.000000e+00> : vector<64x2xf32>
    %65 = tpu.matmul %63, %64, %cst_39 {dimension_numbers = #tpu.dot_dimension_numbers<[1], [0], [0], [1], [0, 0, 1, 1], [], []>} : vector<64x128xf32>, vector<128x2xf32>, vector<64x2xf32> -> vector<64x2xf32>
    %c0_40 = arith.constant 0 : index
    %c0_41 = arith.constant 0 : index
    %66 = vector.load %arg13[%c0_40, %c0_41] : memref<1x2xf32, #tpu.memory_space<vmem>>, vector<1x2xf32>
    %67 = vector.broadcast %66 : vector<1x2xf32> to vector<64x2xf32>
    %68 = arith.addf %65, %67 : vector<64x2xf32>
    %c0_42 = arith.constant 0 : index
    %c0_43 = arith.constant 0 : index
    %69 = vector.load %arg14[%c0_42, %c0_43] : memref<64x2xf32, #tpu.memory_space<vmem>>, vector<64x2xf32>
    tpu.vector_store %arg14[%c0_42, %c0_43], %68 {strides = array<i32>} : memref<64x2xf32, #tpu.memory_space<vmem>>, vector<64x2xf32>,
    return
  }
  func.func @transform_0(%arg0: i32) -> (i32, i32) {
    %c0_i32 = arith.constant 0 : i32
    %c0_i32_0 = arith.constant 0 : i32
    return %arg0, %c0_i32 : i32, i32
  }
  func.func @transform_1(%arg0: i32) -> (i32, i32) {
    %c0_i32 = arith.constant 0 : i32
    %c0_i32_0 = arith.constant 0 : i32
    %c0_i32_1 = arith.constant 0 : i32
    return %c0_i32, %c0_i32_0 : i32, i32
  }
  func.func @transform_2(%arg0: i32) -> (i32, i32) {
    %c0_i32 = arith.constant 0 : i32
    %c0_i32_0 = arith.constant 0 : i32
    %c0_i32_1 = arith.constant 0 : i32
    return %c0_i32, %c0_i32_0 : i32, i32
  }
  func.func @transform_3(%arg0: i32) -> (i32, i32) {
    %c0_i32 = arith.constant 0 : i32
    %c0_i32_0 = arith.constant 0 : i32
    %c0_i32_1 = arith.constant 0 : i32
    return %c0_i32, %c0_i32_0 : i32, i32
  }
  func.func @transform_4(%arg0: i32) -> (i32, i32) {
    %c0_i32 = arith.constant 0 : i32
    %c0_i32_0 = arith.constant 0 : i32
    %c0_i32_1 = arith.constant 0 : i32
    return %c0_i32, %c0_i32_0 : i32, i32
  }
  func.func @transform_5(%arg0: i32) -> (i32, i32) {
    %c0_i32 = arith.constant 0 : i32
    %c0_i32_0 = arith.constant 0 : i32
    %c0_i32_1 = arith.constant 0 : i32
    return %c0_i32, %c0_i32_0 : i32, i32
  }
  func.func @transform_6(%arg0: i32) -> (i32, i32) {
    %c0_i32 = arith.constant 0 : i32
    %c0_i32_0 = arith.constant 0 : i32
    %c0_i32_1 = arith.constant 0 : i32
    return %c0_i32, %c0_i32_0 : i32, i32
  }
  func.func @transform_7(%arg0: i32) -> (i32, i32) {
    %c0_i32 = arith.constant 0 : i32
    %c0_i32_0 = arith.constant 0 : i32
    %c0_i32_1 = arith.constant 0 : i32
    return %c0_i32, %c0_i32_0 : i32, i32
  }
  func.func @transform_8(%arg0: i32) -> (i32, i32) {
    %c0_i32 = arith.constant 0 : i32
    %c0_i32_0 = arith.constant 0 : i32
    %c0_i32_1 = arith.constant 0 : i32
    return %c0_i32, %c0_i32_0 : i32, i32
  }
  func.func @transform_9(%arg0: i32) -> (i32, i32) {
    %c0_i32 = arith.constant 0 : i32
    %c0_i32_0 = arith.constant 0 : i32
    %c0_i32_1 = arith.constant 0 : i32
    return %c0_i32, %c0_i32_0 : i32, i32
  }
  func.func @transform_10(%arg0: i32) -> (i32, i32) {
    %c0_i32 = arith.constant 0 : i32
    %c0_i32_0 = arith.constant 0 : i32
    %c0_i32_1 = arith.constant 0 : i32
    return %c0_i32, %c0_i32_0 : i32, i32
  }
  func.func @transform_11(%arg0: i32) -> (i32, i32) {
    %c0_i32 = arith.constant 0 : i32
    %c0_i32_0 = arith.constant 0 : i32
    %c0_i32_1 = arith.constant 0 : i32
    return %c0_i32, %c0_i32_0 : i32, i32
  }
  func.func @transform_12(%arg0: i32) -> (i32, i32) {
    %c0_i32 = arith.constant 0 : i32
    %c0_i32_0 = arith.constant 0 : i32
    %c0_i32_1 = arith.constant 0 : i32
    return %c0_i32, %c0_i32_0 : i32, i32
  }
  func.func @transform_13(%arg0: i32) -> (i32, i32) {
    %c0_i32 = arith.constant 0 : i32
    %c0_i32_0 = arith.constant 0 : i32
    return %arg0, %c0_i32 : i32, i32
  }
}

</mosaic_0001>

<llo_original>
// kernel: modified_mlp_forward.1
$region0: #{modified_mlp_forward.1}
  #allocation0 [shape = 'u32[]', space=smem, size = 0x4, offset = 0x4, fixed_abs, tag = 'smem constant byte address 0x4 - core index']
  #allocation1 [shape = 'u32[144,128]{1,0:T(1,128)}', space=vmem, size = 0x12000, scoped, tag = 'internal scratch']
  %s0 = inlined_call_operand.vmem [shape: f32[256,4], index: 0, kind: input, shape index: {}]
  %s1 = inlined_call_operand.vmem [shape: f32[4,128], index: 1, kind: input, shape index: {}]
  %s2 = inlined_call_operand.vmem [shape: f32[1,128], index: 2, kind: input, shape index: {}]
  %s3 = inlined_call_operand.vmem [shape: f32[4,128], index: 3, kind: input, shape index: {}]
  %s4 = inlined_call_operand.vmem [shape: f32[1,128], index: 4, kind: input, shape index: {}]
  %s5 = inlined_call_operand.vmem [shape: f32[4,128], index: 5, kind: input, shape index: {}]
  %s6 = inlined_call_operand.vmem [shape: f32[1,128], index: 6, kind: input, shape index: {}]
  %s7 = inlined_call_operand.vmem [shape: f32[128,128], index: 7, kind: input, shape index: {}]
  %s8 = inlined_call_operand.vmem [shape: f32[1,128], index: 8, kind: input, shape index: {}]
  %s9 = inlined_call_operand.vmem [shape: f32[128,128], index: 9, kind: input, shape index: {}]
  %s10 = inlined_call_operand.vmem [shape: f32[1,128], index: 10, kind: input, shape index: {}]
  %s11 = inlined_call_operand.vmem [shape: f32[128,2], index: 11, kind: input, shape index: {}]
  %s12 = inlined_call_operand.vmem [shape: f32[1,2], index: 12, kind: input, shape index: {}]
  %s13 = inlined_call_operand.vmem [shape: f32[256,2], index: 13, kind: output, shape index: {}]
  %s14 = sld [smem:[#allocation0]]
  $region85: #{modified_mlp_forward.1} parent=0
    _
  %s16 = ssub.s32 1, %s14
  %s17 = scalar_select 0, %s16, %s14
  loop: start=0, step=1, limit=6
  $region2: #{modified_mlp_forward.1} parent=0 // loop_pre_header
    _
  $region3: #{modified_mlp_forward.1} parent=0 // loop_header
    %s19 = sphi 0, %s23
    %p20 = scmp.ge.s32.totalorder %s19, 6
    %s29 = sphi 0, %s31
    %s32 = sphi 0, %s29
    %s33 = sphi 0, %s32
    %s49 = sphi 0, %s33
    %s53 = sphi 0, %s53
    %s55 = sphi 0, %s53
    %s56 = sphi 0, %s55
    %s70 = sphi 0, %s56
    %s74 = sphi 0, %s74
    %s76 = sphi 0, %s74
    %s77 = sphi 0, %s76
    %s91 = sphi 0, %s77
    %s95 = sphi 0, %s95
    %s97 = sphi 0, %s95
    %s98 = sphi 0, %s97
    %s112 = sphi 0, %s98
    %s116 = sphi 0, %s116
    %s118 = sphi 0, %s116
    %s119 = sphi 0, %s118
    %s133 = sphi 0, %s119
    %s137 = sphi 0, %s137
    %s139 = sphi 0, %s137
    %s140 = sphi 0, %s139
    %s154 = sphi 0, %s140
    %s158 = sphi 0, %s158
    %s160 = sphi 0, %s158
    %s161 = sphi 0, %s160
    %s175 = sphi 0, %s161
    %s179 = sphi 0, %s179
    %s181 = sphi 0, %s179
    %s182 = sphi 0, %s181
    %s196 = sphi 0, %s182
    %s200 = sphi 0, %s200
    %s202 = sphi 0, %s200
    %s203 = sphi 0, %s202
    %s217 = sphi 0, %s203
    %s221 = sphi 0, %s221
    %s223 = sphi 0, %s221
    %s224 = sphi 0, %s223
    %s238 = sphi 0, %s224
    %s242 = sphi 0, %s242
    %s244 = sphi 0, %s242
    %s245 = sphi 0, %s244
    %s259 = sphi 0, %s245
    %s263 = sphi 0, %s263
    %s265 = sphi 0, %s263
    %s266 = sphi 0, %s265
    %s280 = sphi 0, %s266
    %s284 = sphi 0, %s284
    %s286 = sphi 0, %s284
    %s287 = sphi 0, %s286
    %s301 = sphi 0, %s287
    %s307 = sphi 0, %s309
    %s310 = sphi 0, %s307
    %s311 = sphi 0, %s310
    %s327 = sphi 0, %s311
  $region4: #{modified_mlp_forward.1} parent=0 // loop_header_branch
    %22 = sbr.rel (%p20) target = $region8
  $region5: #{modified_mlp_forward.1} parent=0 // loop_body
    %s24 = ssub.s32 %s19, 1
    %s25 = ssub.s32 %s19, 2
    %s26 = sadd.s32 %s19, 1
    %s27 = ssub.s32 %s19, %s26
    %p28 = scmp.eq.s32.totalorder %s27, 0
    %s30 = sadd.s32 %s29, 1
    %s31 = scalar_select %p28, %s29, %s30
    %p34 = pneg %p28
    %p35 = scmp.eq.s32.totalorder %s19, 3
    %p36 = por %p34, %p35
    %p37 = scmp.ne.s32.totalorder %s29, %s32
    %p38 = scmp.eq.s32.totalorder %s19, 0
    %p39 = por %p37, %p38
    %p40 = scmp.ne.s32.totalorder %s29, %s32
    %p41 = scmp.eq.s32.totalorder %s24, 3
    %p42 = por %p40, %p41
    %p43 = scmp.ne.s32.totalorder %s32, %s33
    %p44 = scmp.eq.s32.totalorder %s24, 0
    %p45 = por %p43, %p44
    %p46 = scmp.ne.s32.totalorder %s32, %s33
    %p47 = scmp.eq.s32.totalorder %s25, 3
    %p48 = por %p46, %p47
    %p50 = scmp.ne.s32.totalorder %s33, %s49
    %p51 = scmp.eq.s32.totalorder %s25, 0
    %p52 = por %p50, %p51
    %s54 = sadd.s32 %s53, 1
    %p57 = scmp.eq.s32.totalorder %s19, 3
    %p58 = scmp.ne.s32.totalorder %s53, %s55
    %p59 = scmp.eq.s32.totalorder %s19, 0
    %p60 = por %p58, %p59
    %p61 = scmp.ne.s32.totalorder %s53, %s55
    %p62 = scmp.eq.s32.totalorder %s24, 3
    %p63 = por %p61, %p62
    %p64 = scmp.ne.s32.totalorder %s55, %s56
    %p65 = scmp.eq.s32.totalorder %s24, 0
    %p66 = por %p64, %p65
    %p67 = scmp.ne.s32.totalorder %s55, %s56
    %p68 = scmp.eq.s32.totalorder %s25, 3
    %p69 = por %p67, %p68
    %p71 = scmp.ne.s32.totalorder %s56, %s70
    %p72 = scmp.eq.s32.totalorder %s25, 0
    %p73 = por %p71, %p72
    %s75 = sadd.s32 %s74, 1
    %p78 = scmp.eq.s32.totalorder %s19, 3
    %p79 = scmp.ne.s32.totalorder %s74, %s76
    %p80 = scmp.eq.s32.totalorder %s19, 0
    %p81 = por %p79, %p80
    %p82 = scmp.ne.s32.totalorder %s74, %s76
    %p83 = scmp.eq.s32.totalorder %s24, 3
    %p84 = por %p82, %p83
    %p85 = scmp.ne.s32.totalorder %s76, %s77
    %p86 = scmp.eq.s32.totalorder %s24, 0
    %p87 = por %p85, %p86
    %p88 = scmp.ne.s32.totalorder %s76, %s77
    %p89 = scmp.eq.s32.totalorder %s25, 3
    %p90 = por %p88, %p89
    %p92 = scmp.ne.s32.totalorder %s77, %s91
    %p93 = scmp.eq.s32.totalorder %s25, 0
    %p94 = por %p92, %p93
    %s96 = sadd.s32 %s95, 1
    %p99 = scmp.eq.s32.totalorder %s19, 3
    %p100 = scmp.ne.s32.totalorder %s95, %s97
    %p101 = scmp.eq.s32.totalorder %s19, 0
    %p102 = por %p100, %p101
    %p103 = scmp.ne.s32.totalorder %s95, %s97
    %p104 = scmp.eq.s32.totalorder %s24, 3
    %p105 = por %p103, %p104
    %p106 = scmp.ne.s32.totalorder %s97, %s98
    %p107 = scmp.eq.s32.totalorder %s24, 0
    %p108 = por %p106, %p107
    %p109 = scmp.ne.s32.totalorder %s97, %s98
    %p110 = scmp.eq.s32.totalorder %s25, 3
    %p111 = por %p109, %p110
    %p113 = scmp.ne.s32.totalorder %s98, %s112
    %p114 = scmp.eq.s32.totalorder %s25, 0
    %p115 = por %p113, %p114
    %s117 = sadd.s32 %s116, 1
    %p120 = scmp.eq.s32.totalorder %s19, 3
    %p121 = scmp.ne.s32.totalorder %s116, %s118
    %p122 = scmp.eq.s32.totalorder %s19, 0
    %p123 = por %p121, %p122
    %p124 = scmp.ne.s32.totalorder %s116, %s118
    %p125 = scmp.eq.s32.totalorder %s24, 3
    %p126 = por %p124, %p125
    %p127 = scmp.ne.s32.totalorder %s118, %s119
    %p128 = scmp.eq.s32.totalorder %s24, 0
    %p129 = por %p127, %p128
    %p130 = scmp.ne.s32.totalorder %s118, %s119
    %p131 = scmp.eq.s32.totalorder %s25, 3
    %p132 = por %p130, %p131
    %p134 = scmp.ne.s32.totalorder %s119, %s133
    %p135 = scmp.eq.s32.totalorder %s25, 0
    %p136 = por %p134, %p135
    %s138 = sadd.s32 %s137, 1
    %p141 = scmp.eq.s32.totalorder %s19, 3
    %p142 = scmp.ne.s32.totalorder %s137, %s139
    %p143 = scmp.eq.s32.totalorder %s19, 0
    %p144 = por %p142, %p143
    %p145 = scmp.ne.s32.totalorder %s137, %s139
    %p146 = scmp.eq.s32.totalorder %s24, 3
    %p147 = por %p145, %p146
    %p148 = scmp.ne.s32.totalorder %s139, %s140
    %p149 = scmp.eq.s32.totalorder %s24, 0
    %p150 = por %p148, %p149
    %p151 = scmp.ne.s32.totalorder %s139, %s140
    %p152 = scmp.eq.s32.totalorder %s25, 3
    %p153 = por %p151, %p152
    %p155 = scmp.ne.s32.totalorder %s140, %s154
    %p156 = scmp.eq.s32.totalorder %s25, 0
    %p157 = por %p155, %p156
    %s159 = sadd.s32 %s158, 1
    %p162 = scmp.eq.s32.totalorder %s19, 3
    %p163 = scmp.ne.s32.totalorder %s158, %s160
    %p164 = scmp.eq.s32.totalorder %s19, 0
    %p165 = por %p163, %p164
    %p166 = scmp.ne.s32.totalorder %s158, %s160
    %p167 = scmp.eq.s32.totalorder %s24, 3
    %p168 = por %p166, %p167
    %p169 = scmp.ne.s32.totalorder %s160, %s161
    %p170 = scmp.eq.s32.totalorder %s24, 0
    %p171 = por %p169, %p170
    %p172 = scmp.ne.s32.totalorder %s160, %s161
    %p173 = scmp.eq.s32.totalorder %s25, 3
    %p174 = por %p172, %p173
    %p176 = scmp.ne.s32.totalorder %s161, %s175
    %p177 = scmp.eq.s32.totalorder %s25, 0
    %p178 = por %p176, %p177
    %s180 = sadd.s32 %s179, 1
    %p183 = scmp.eq.s32.totalorder %s19, 3
    %p184 = scmp.ne.s32.totalorder %s179, %s181
    %p185 = scmp.eq.s32.totalorder %s19, 0
    %p186 = por %p184, %p185
    %p187 = scmp.ne.s32.totalorder %s179, %s181
    %p188 = scmp.eq.s32.totalorder %s24, 3
    %p189 = por %p187, %p188
    %p190 = scmp.ne.s32.totalorder %s181, %s182
    %p191 = scmp.eq.s32.totalorder %s24, 0
    %p192 = por %p190, %p191
    %p193 = scmp.ne.s32.totalorder %s181, %s182
    %p194 = scmp.eq.s32.totalorder %s25, 3
    %p195 = por %p193, %p194
    %p197 = scmp.ne.s32.totalorder %s182, %s196
    %p198 = scmp.eq.s32.totalorder %s25, 0
    %p199 = por %p197, %p198
    %s201 = sadd.s32 %s200, 1
    %p204 = scmp.eq.s32.totalorder %s19, 3
    %p205 = scmp.ne.s32.totalorder %s200, %s202
    %p206 = scmp.eq.s32.totalorder %s19, 0
    %p207 = por %p205, %p206
    %p208 = scmp.ne.s32.totalorder %s200, %s202
    %p209 = scmp.eq.s32.totalorder %s24, 3
    %p210 = por %p208, %p209
    %p211 = scmp.ne.s32.totalorder %s202, %s203
    %p212 = scmp.eq.s32.totalorder %s24, 0
    %p213 = por %p211, %p212
    %p214 = scmp.ne.s32.totalorder %s202, %s203
    %p215 = scmp.eq.s32.totalorder %s25, 3
    %p216 = por %p214, %p215
    %p218 = scmp.ne.s32.totalorder %s203, %s217
    %p219 = scmp.eq.s32.totalorder %s25, 0
    %p220 = por %p218, %p219
    %s222 = sadd.s32 %s221, 1
    %p225 = scmp.eq.s32.totalorder %s19, 3
    %p226 = scmp.ne.s32.totalorder %s221, %s223
    %p227 = scmp.eq.s32.totalorder %s19, 0
    %p228 = por %p226, %p227
    %p229 = scmp.ne.s32.totalorder %s221, %s223
    %p230 = scmp.eq.s32.totalorder %s24, 3
    %p231 = por %p229, %p230
    %p232 = scmp.ne.s32.totalorder %s223, %s224
    %p233 = scmp.eq.s32.totalorder %s24, 0
    %p234 = por %p232, %p233
    %p235 = scmp.ne.s32.totalorder %s223, %s224
    %p236 = scmp.eq.s32.totalorder %s25, 3
    %p237 = por %p235, %p236
    %p239 = scmp.ne.s32.totalorder %s224, %s238
    %p240 = scmp.eq.s32.totalorder %s25, 0
    %p241 = por %p239, %p240
    %s243 = sadd.s32 %s242, 1
    %p246 = scmp.eq.s32.totalorder %s19, 3
    %p247 = scmp.ne.s32.totalorder %s242, %s244
    %p248 = scmp.eq.s32.totalorder %s19, 0
    %p249 = por %p247, %p248
    %p250 = scmp.ne.s32.totalorder %s242, %s244
    %p251 = scmp.eq.s32.totalorder %s24, 3
    %p252 = por %p250, %p251
    %p253 = scmp.ne.s32.totalorder %s244, %s245
    %p254 = scmp.eq.s32.totalorder %s24, 0
    %p255 = por %p253, %p254
    %p256 = scmp.ne.s32.totalorder %s244, %s245
    %p257 = scmp.eq.s32.totalorder %s25, 3
    %p258 = por %p256, %p257
    %p260 = scmp.ne.s32.totalorder %s245, %s259
    %p261 = scmp.eq.s32.totalorder %s25, 0
    %p262 = por %p260, %p261
    %s264 = sadd.s32 %s263, 1
    %p267 = scmp.eq.s32.totalorder %s19, 3
    %p268 = scmp.ne.s32.totalorder %s263, %s265
    %p269 = scmp.eq.s32.totalorder %s19, 0
    %p270 = por %p268, %p269
    %p271 = scmp.ne.s32.totalorder %s263, %s265
    %p272 = scmp.eq.s32.totalorder %s24, 3
    %p273 = por %p271, %p272
    %p274 = scmp.ne.s32.totalorder %s265, %s266
    %p275 = scmp.eq.s32.totalorder %s24, 0
    %p276 = por %p274, %p275
    %p277 = scmp.ne.s32.totalorder %s265, %s266
    %p278 = scmp.eq.s32.totalorder %s25, 3
    %p279 = por %p277, %p278
    %p281 = scmp.ne.s32.totalorder %s266, %s280
    %p282 = scmp.eq.s32.totalorder %s25, 0
    %p283 = por %p281, %p282
    %s285 = sadd.s32 %s284, 1
    %p288 = scmp.eq.s32.totalorder %s19, 3
    %p289 = scmp.ne.s32.totalorder %s284, %s286
    %p290 = scmp.eq.s32.totalorder %s19, 0
    %p291 = por %p289, %p290
    %p292 = scmp.ne.s32.totalorder %s284, %s286
    %p293 = scmp.eq.s32.totalorder %s24, 3
    %p294 = por %p292, %p293
    %p295 = scmp.ne.s32.totalorder %s286, %s287
    %p296 = scmp.eq.s32.totalorder %s24, 0
    %p297 = por %p295, %p296
    %p298 = scmp.ne.s32.totalorder %s286, %s287
    %p299 = scmp.eq.s32.totalorder %s25, 3
    %p300 = por %p298, %p299
    %p302 = scmp.ne.s32.totalorder %s287, %s301
    %p303 = scmp.eq.s32.totalorder %s25, 0
    %p304 = por %p302, %p303
    %s305 = ssub.s32 %s19, %s26
    %p306 = scmp.eq.s32.totalorder %s305, 0
    %s308 = sadd.s32 %s307, 1
    %s309 = scalar_select %p306, %s307, %s308
    %p312 = pneg %p306
    %p313 = scmp.eq.s32.totalorder %s19, 3
    %p314 = por %p312, %p313
    %p315 = scmp.ne.s32.totalorder %s307, %s310
    %p316 = scmp.eq.s32.totalorder %s19, 0
    %p317 = por %p315, %p316
    %p318 = scmp.ne.s32.totalorder %s307, %s310
    %p319 = scmp.eq.s32.totalorder %s24, 3
    %p320 = por %p318, %p319
    %p321 = scmp.ne.s32.totalorder %s310, %s311
    %p322 = scmp.eq.s32.totalorder %s24, 0
    %p323 = por %p321, %p322
    %p324 = scmp.ne.s32.totalorder %s310, %s311
    %p325 = scmp.eq.s32.totalorder %s25, 3
    %p326 = por %p324, %p325
    %p328 = scmp.ne.s32.totalorder %s311, %s327
    %p329 = scmp.eq.s32.totalorder %s25, 0
    %p330 = por %p328, %p329
    %p331 = scmp.le.s32.totalorder 1, %s19
    %p332 = scmp.lt.s32.totalorder %s19, 5
    %p333 = pnand %p331, %p332
    %p334 = pneg %p333
    // Predicated region
    $region9: #{modified_mlp_forward.1} parent=5 // pred_check
      _
    $region10: #{modified_mlp_forward.1} parent=5 // pred_check_branch
      %336 = sbr.rel (%p333) target = $region12
    $region11: #{modified_mlp_forward.1} parent=5 // pred_region
      %s337 = ssub.s32 %s19, 1
      // Predicated region
      $region13: #{modified_mlp_forward.1} parent=11 // pred_check
        %p338 = pneg %p66
      $region14: #{modified_mlp_forward.1} parent=11 // pred_check_branch
        %340 = sbr.rel (%p338) target = $region16
      $region15: #{modified_mlp_forward.1} parent=11 // pred_region
        _
      $region16: #{modified_mlp_forward.1} parent=11 // pred_fallthru
        _
      // Predicated region
      $region17: #{modified_mlp_forward.1} parent=11 // pred_check
        %p341 = pneg %p87
      $region18: #{modified_mlp_forward.1} parent=11 // pred_check_branch
        %343 = sbr.rel (%p341) target = $region20
      $region19: #{modified_mlp_forward.1} parent=11 // pred_region
        _
      $region20: #{modified_mlp_forward.1} parent=11 // pred_fallthru
        _
      // Predicated region
      $region21: #{modified_mlp_forward.1} parent=11 // pred_check
        %p344 = pneg %p108
      $region22: #{modified_mlp_forward.1} parent=11 // pred_check_branch
        %346 = sbr.rel (%p344) target = $region24
      $region23: #{modified_mlp_forward.1} parent=11 // pred_region
        _
      $region24: #{modified_mlp_forward.1} parent=11 // pred_fallthru
        _
      // Predicated region
      $region25: #{modified_mlp_forward.1} parent=11 // pred_check
        %p347 = pneg %p129
      $region26: #{modified_mlp_forward.1} parent=11 // pred_check_branch
        %349 = sbr.rel (%p347) target = $region28
      $region27: #{modified_mlp_forward.1} parent=11 // pred_region
        _
      $region28: #{modified_mlp_forward.1} parent=11 // pred_fallthru
        _
      // Predicated region
      $region29: #{modified_mlp_forward.1} parent=11 // pred_check
        %p350 = pneg %p150
      $region30: #{modified_mlp_forward.1} parent=11 // pred_check_branch
        %352 = sbr.rel (%p350) target = $region32
      $region31: #{modified_mlp_forward.1} parent=11 // pred_region
        _
      $region32: #{modified_mlp_forward.1} parent=11 // pred_fallthru
        _
      // Predicated region
      $region33: #{modified_mlp_forward.1} parent=11 // pred_check
        %p353 = pneg %p171
      $region34: #{modified_mlp_forward.1} parent=11 // pred_check_branch
        %355 = sbr.rel (%p353) target = $region36
      $region35: #{modified_mlp_forward.1} parent=11 // pred_region
        _
      $region36: #{modified_mlp_forward.1} parent=11 // pred_fallthru
        _
      // Predicated region
      $region37: #{modified_mlp_forward.1} parent=11 // pred_check
        %p356 = pneg %p192
      $region38: #{modified_mlp_forward.1} parent=11 // pred_check_branch
        %358 = sbr.rel (%p356) target = $region40
      $region39: #{modified_mlp_forward.1} parent=11 // pred_region
        _
      $region40: #{modified_mlp_forward.1} parent=11 // pred_fallthru
        _
      // Predicated region
      $region41: #{modified_mlp_forward.1} parent=11 // pred_check
        %p359 = pneg %p213
      $region42: #{modified_mlp_forward.1} parent=11 // pred_check_branch
        %361 = sbr.rel (%p359) target = $region44
      $region43: #{modified_mlp_forward.1} parent=11 // pred_region
        _
      $region44: #{modified_mlp_forward.1} parent=11 // pred_fallthru
        _
      // Predicated region
      $region45: #{modified_mlp_forward.1} parent=11 // pred_check
        %p362 = pneg %p234
      $region46: #{modified_mlp_forward.1} parent=11 // pred_check_branch
        %364 = sbr.rel (%p362) target = $region48
      $region47: #{modified_mlp_forward.1} parent=11 // pred_region
        _
      $region48: #{modified_mlp_forward.1} parent=11 // pred_fallthru
        _
      // Predicated region
      $region49: #{modified_mlp_forward.1} parent=11 // pred_check
        %p365 = pneg %p255
      $region50: #{modified_mlp_forward.1} parent=11 // pred_check_branch
        %367 = sbr.rel (%p365) target = $region52
      $region51: #{modified_mlp_forward.1} parent=11 // pred_region
        _
      $region52: #{modified_mlp_forward.1} parent=11 // pred_fallthru
        _
      // Predicated region
      $region53: #{modified_mlp_forward.1} parent=11 // pred_check
        %p368 = pneg %p276
      $region54: #{modified_mlp_forward.1} parent=11 // pred_check_branch
        %370 = sbr.rel (%p368) target = $region56
      $region55: #{modified_mlp_forward.1} parent=11 // pred_region
        _
      $region56: #{modified_mlp_forward.1} parent=11 // pred_fallthru
        _
      // Predicated region
      $region57: #{modified_mlp_forward.1} parent=11 // pred_check
        %p371 = pneg %p297
      $region58: #{modified_mlp_forward.1} parent=11 // pred_check_branch
        %373 = sbr.rel (%p371) target = $region60
      $region59: #{modified_mlp_forward.1} parent=11 // pred_region
        _
      $region60: #{modified_mlp_forward.1} parent=11 // pred_fallthru
        _
    $region12: #{modified_mlp_forward.1} parent=5 // pred_fallthru
      _
    %p374 = scmp.lt.s32.totalorder %s19, 4
    // Predicated region
    $region61: #{modified_mlp_forward.1} parent=5 // pred_check
      %p375 = pneg %p374
    $region62: #{modified_mlp_forward.1} parent=5 // pred_check_branch
      %377 = sbr.rel (%p375) target = $region64
    $region63: #{modified_mlp_forward.1} parent=5 // pred_region
      // Predicated region
      $region65: #{modified_mlp_forward.1} parent=63 // pred_check
        %p378 = pneg %p39
      $region66: #{modified_mlp_forward.1} parent=63 // pred_check_branch
        %380 = sbr.rel (%p378) target = $region68
      $region67: #{modified_mlp_forward.1} parent=63 // pred_region
        %s381 = smul.u32 8, %s19
        %p382 = scmp.lt.s32.totalorder %s381, 31
        %s383 = scalar_select %p382, %s381, 31
        %s384 = smul.addr %s383, 8
        %s385 = scalar_lea.vmem %s0, %s384
        %s386 = smul.u32 8, %s19
      $region68: #{modified_mlp_forward.1} parent=63 // pred_fallthru
        _
    $region64: #{modified_mlp_forward.1} parent=5 // pred_fallthru
      _
    %p387 = scmp.le.s32.totalorder 1, %s19
    %p388 = scmp.lt.s32.totalorder %s19, 5
    %p389 = pnand %p387, %p388
    %p390 = pneg %p389
    // Predicated region
    $region69: #{modified_mlp_forward.1} parent=5 // pred_check
      _
    $region70: #{modified_mlp_forward.1} parent=5 // pred_check_branch
      %392 = sbr.rel (%p389) target = $region72
    $region71: #{modified_mlp_forward.1} parent=5 // pred_region
      %s393 = ssub.s32 %s19, 1
      %s394 = smul.u32 8, %s24
      %p395 = scmp.lt.s32.totalorder %s394, 31
      %s396 = scalar_select %p395, %s394, 31
      %s397 = smul.addr %s396, 8
      %s398 = scalar_lea.vmem %s0, %s397
      %p399 = pneg %p45
      %p400 = pneg %p42
      %p401 = pneg %p66
      %p402 = pneg %p63
      %p403 = pneg %p87
      %p404 = pneg %p84
      %p405 = pneg %p108
      %p406 = pneg %p105
      %p407 = pneg %p129
      %p408 = pneg %p126
      %p409 = pneg %p150
      %p410 = pneg %p147
      %p411 = pneg %p171
      %p412 = pneg %p168
      %p413 = pneg %p192
      %p414 = pneg %p189
      %p415 = pneg %p213
      %p416 = pneg %p210
      %p417 = pneg %p234
      %p418 = pneg %p231
      %p419 = pneg %p255
      %p420 = pneg %p252
      %p421 = pneg %p276
      %p422 = pneg %p273
      %p423 = pneg %p297
      %p424 = pneg %p294
      %p425 = pneg %p323
      %p426 = pneg %p320
      %s427 = smul.u32 8, %s24
      %p428 = scmp.lt.s32.totalorder %s427, 31
      %s429 = scalar_select %p428, %s427, 31
      %s430 = smul.addr %s429, 8
      %s431 = scalar_lea.vmem %s13, %s430
      %s432 = smul.u32 8, %s24
      %p433 = scmp.lt.s32.totalorder %s432, 31
      %s434 = scalar_select %p433, %s432, 31
      %s435 = smul.addr %s434, 8
      %s436 = scalar_lea.vmem %s0, %s435
      %s437 = smul.u32 8, %s24
      %s438 = smul.u32 8, %s24
      %p439 = scmp.lt.s32.totalorder %s438, 31
      %s440 = scalar_select %p439, %s438, 31
      %s441 = smul.addr %s440, 8
      %s442 = scalar_lea.vmem %s13, %s441
      %s443 = smul.u32 8, %s24
      %v444 = vld [vmem:[%s436] sm:$0xff]
      %v445 = vld [vmem:[%s436 + $0x8] sm:$0xff]
      %v446 = vld [vmem:[%s436 + $0x10] sm:$0xff]
      %v447 = vld [vmem:[%s436 + $0x18] sm:$0xff]
      %v448 = vld [vmem:[%s436 + $0x20] sm:$0xff]
      %v449 = vld [vmem:[%s436 + $0x28] sm:$0xff]
      %v450 = vld [vmem:[%s436 + $0x30] sm:$0xff]
      %v451 = vld [vmem:[%s436 + $0x38] sm:$0xff]
      %v452 = vld [vmem:[%s1] sm:$0xf]
      %v453 = vld [vmem:[%s2] sm:$0x1]
      %v455 = vlaneseq
      %v456 = vshrl.u32 %v455, 7
      %v457 = vsub.s32 0, %v456
      %v458 = vrot.slane %v453, %v457
      %vm460 = vcmask 31744
      %v462 = vsel %vm460, %v444, 0
      %v465 = vsel %vm460, %v445, 0
      %v468 = vsel %vm460, %v446, 0
      %v471 = vsel %vm460, %v447, 0
      %v474 = vsel %vm460, %v448, 0
      %v477 = vsel %vm460, %v449, 0
      %v480 = vsel %vm460, %v450, 0
      %v483 = vsel %vm460, %v451, 0
      %vm485 = vcmask 1043456
      %v487 = vsel %vm485, %v452, 0
      %489 = vmatprep.subr.mxu0 0.0
      %490 = vmatpush1.msra.mxu0 0.0
      %491 = vmatprep.subr.mxu0 0.0
      %492 = vmatpush1.msra.mxu0 0.0
      %493 = vmatprep.subr.mxu0 0.0
      %494 = vmatpush1.msra.mxu0 0.0
      %495 = vmatprep.subr.mxu0 0.0
      %496 = vmatpush1.msra.mxu0 0.0
      %497 = vmatprep.subr.mxu0 0.0
      %498 = vmatpush1.msra.mxu0 0.0
      %499 = vmatprep.subr.mxu0 0.0
      %500 = vmatpush1.msra.mxu0 0.0
      %501 = vmatprep.subr.mxu0 0.0
      %502 = vmatpush1.msra.mxu0 0.0
      %503 = vmatprep.subr.mxu0 0.0
      %504 = vmatpush1.msra.mxu0 0.0
      %505 = vmatprep.subr.mxu0 0.0
      %506 = vmatpush1.msra.mxu0 0.0
      %507 = vmatprep.subr.mxu0 0.0
      %508 = vmatpush1.msra.mxu0 0.0
      %509 = vmatprep.subr.mxu0 0.0
      %510 = vmatpush1.msra.mxu0 0.0
      %511 = vmatprep.subr.mxu0 0.0
      %512 = vmatpush1.msra.mxu0 0.0
      %513 = vmatprep.subr.mxu0 0.0
      %514 = vmatpush1.msra.mxu0 0.0
      %515 = vmatprep.subr.mxu0 0.0
      %516 = vmatpush1.msra.mxu0 0.0
      %517 = vmatprep.subr.mxu0 0.0
      %518 = vmatpush1.msra.mxu0 0.0
      %519 = vmatprep.subr.mxu0 0.0
      %520 = vmatpush1.msra.mxu0 %v487
      %521 = vmatprep.subr.mxu0 0.0
      %522 = vmatpush2.msra.mxu0 0.0
      %523 = vmatprep.subr.mxu0 0.0
      %524 = vmatpush2.msra.mxu0 0.0
      %525 = vmatprep.subr.mxu0 0.0
      %526 = vmatpush2.msra.mxu0 0.0
      %527 = vmatprep.subr.mxu0 0.0
      %528 = vmatpush2.msra.mxu0 0.0
      %529 = vmatprep.subr.mxu0 0.0
      %530 = vmatpush2.msra.mxu0 0.0
      %531 = vmatprep.subr.mxu0 0.0
      %532 = vmatpush2.msra.mxu0 0.0
      %533 = vmatprep.subr.mxu0 0.0
      %534 = vmatpush2.msra.mxu0 0.0
      %535 = vmatprep.subr.mxu0 0.0
      %536 = vmatpush2.msra.mxu0 0.0
      %537 = vmatprep.subr.mxu0 0.0
      %538 = vmatpush2.msra.mxu0 0.0
      %539 = vmatprep.subr.mxu0 0.0
      %540 = vmatpush2.msra.mxu0 0.0
      %541 = vmatprep.subr.mxu0 0.0
      %542 = vmatpush2.msra.mxu0 0.0
      %543 = vmatprep.subr.mxu0 0.0
      %544 = vmatpush2.msra.mxu0 0.0
      %545 = vmatprep.subr.mxu0 0.0
      %546 = vmatpush2.msra.mxu0 0.0
      %547 = vmatprep.subr.mxu0 0.0
      %548 = vmatpush2.msra.mxu0 0.0
      %549 = vmatprep.subr.mxu0 0.0
      %550 = vmatpush2.msra.mxu0 0.0
      %551 = vmatprep.subr.mxu0 0.0
      %552 = vmatpush2.msra.mxu0 0.0
      %553 = vmatprep.mubr.f32.mxu0 0.0
      %554 = vmatmul.mubr.f32.gmra.mxu0 %v462
      %v555 = vpop.f32.mrf.mxu0
      %v556 = vadd.f32 %v458, %v555
      %v557 = vpop.f32.mrf.mxu0
      %558 = vmatprep.mubr.f32.mxu0 0.0
      %559 = vmatmul.mubr.f32.gmra.mxu0 %v465
      %v560 = vpop.f32.mrf.mxu0
      %v561 = vadd.f32 %v458, %v560
      %v562 = vpop.f32.mrf.mxu0
      %563 = vmatprep.mubr.f32.mxu0 0.0
      %564 = vmatmul.mubr.f32.gmra.mxu0 %v468
      %v565 = vpop.f32.mrf.mxu0
      %v566 = vadd.f32 %v458, %v565
      %v567 = vpop.f32.mrf.mxu0
      %568 = vmatprep.mubr.f32.mxu0 0.0
      %569 = vmatmul.mubr.f32.gmra.mxu0 %v471
      %v570 = vpop.f32.mrf.mxu0
      %v571 = vadd.f32 %v458, %v570
      %v572 = vpop.f32.mrf.mxu0
      %573 = vmatprep.mubr.f32.mxu0 0.0
      %574 = vmatmul.mubr.f32.gmra.mxu0 %v474
      %v575 = vpop.f32.mrf.mxu0
      %v576 = vadd.f32 %v458, %v575
      %v577 = vpop.f32.mrf.mxu0
      %578 = vmatprep.mubr.f32.mxu0 0.0
      %579 = vmatmul.mubr.f32.gmra.mxu0 %v477
      %v580 = vpop.f32.mrf.mxu0
      %v581 = vadd.f32 %v458, %v580
      %v582 = vpop.f32.mrf.mxu0
      %583 = vmatprep.mubr.f32.mxu0 0.0
      %584 = vmatmul.mubr.f32.gmra.mxu0 %v480
      %v585 = vpop.f32.mrf.mxu0
      %v586 = vadd.f32 %v458, %v585
      %v587 = vpop.f32.mrf.mxu0
      %588 = vmatprep.mubr.f32.mxu0 0.0
      %589 = vmatmul.mubr.f32.gmra.mxu0 %v483
      %v590 = vpop.f32.mrf.mxu0
      %v591 = vadd.f32 %v458, %v590
      %v592 = vpop.f32.mrf.mxu0
      %593 = vdwg.mxu0
      %v594 = vtanh.pop %v556
      %v595 = vtanh.pop %v561
      %v596 = vtanh.pop %v566
      %v597 = vtanh.pop %v571
      %v598 = vtanh.pop %v576
      %v599 = vtanh.pop %v581
      %v600 = vtanh.pop %v586
      %v601 = vtanh.pop %v591
      %v602 = vld [vmem:[%s3] sm:$0xf]
      %v603 = vld [vmem:[%s4] sm:$0x1]
      %v605 = vlaneseq
      %v606 = vshrl.u32 %v605, 7
      %v607 = vsub.s32 0, %v606
      %v608 = vrot.slane %v603, %v607
      %v611 = vsel %vm485, %v602, 0
      %613 = vmatprep.subr.mxu0 0.0
      %614 = vmatpush1.msra.mxu0 0.0
      %615 = vmatprep.subr.mxu0 0.0
      %616 = vmatpush1.msra.mxu0 0.0
      %617 = vmatprep.subr.mxu0 0.0
      %618 = vmatpush1.msra.mxu0 0.0
      %619 = vmatprep.subr.mxu0 0.0
      %620 = vmatpush1.msra.mxu0 0.0
      %621 = vmatprep.subr.mxu0 0.0
      %622 = vmatpush1.msra.mxu0 0.0
      %623 = vmatprep.subr.mxu0 0.0
      %624 = vmatpush1.msra.mxu0 0.0
      %625 = vmatprep.subr.mxu0 0.0
      %626 = vmatpush1.msra.mxu0 0.0
      %627 = vmatprep.subr.mxu0 0.0
      %628 = vmatpush1.msra.mxu0 0.0
      %629 = vmatprep.subr.mxu0 0.0
      %630 = vmatpush1.msra.mxu0 0.0
      %631 = vmatprep.subr.mxu0 0.0
      %632 = vmatpush1.msra.mxu0 0.0
      %633 = vmatprep.subr.mxu0 0.0
      %634 = vmatpush1.msra.mxu0 0.0
      %635 = vmatprep.subr.mxu0 0.0
      %636 = vmatpush1.msra.mxu0 0.0
      %637 = vmatprep.subr.mxu0 0.0
      %638 = vmatpush1.msra.mxu0 0.0
      %639 = vmatprep.subr.mxu0 0.0
      %640 = vmatpush1.msra.mxu0 0.0
      %641 = vmatprep.subr.mxu0 0.0
      %642 = vmatpush1.msra.mxu0 0.0
      %643 = vmatprep.subr.mxu0 0.0
      %644 = vmatpush1.msra.mxu0 %v611
      %645 = vmatprep.subr.mxu0 0.0
      %646 = vmatpush2.msra.mxu0 0.0
      %647 = vmatprep.subr.mxu0 0.0
      %648 = vmatpush2.msra.mxu0 0.0
      %649 = vmatprep.subr.mxu0 0.0
      %650 = vmatpush2.msra.mxu0 0.0
      %651 = vmatprep.subr.mxu0 0.0
      %652 = vmatpush2.msra.mxu0 0.0
      %653 = vmatprep.subr.mxu0 0.0
      %654 = vmatpush2.msra.mxu0 0.0
      %655 = vmatprep.subr.mxu0 0.0
      %656 = vmatpush2.msra.mxu0 0.0
      %657 = vmatprep.subr.mxu0 0.0
      %658 = vmatpush2.msra.mxu0 0.0
      %659 = vmatprep.subr.mxu0 0.0
      %660 = vmatpush2.msra.mxu0 0.0
      %661 = vmatprep.subr.mxu0 0.0
      %662 = vmatpush2.msra.mxu0 0.0
      %663 = vmatprep.subr.mxu0 0.0
      %664 = vmatpush2.msra.mxu0 0.0
      %665 = vmatprep.subr.mxu0 0.0
      %666 = vmatpush2.msra.mxu0 0.0
      %667 = vmatprep.subr.mxu0 0.0
      %668 = vmatpush2.msra.mxu0 0.0
      %669 = vmatprep.subr.mxu0 0.0
      %670 = vmatpush2.msra.mxu0 0.0
      %671 = vmatprep.subr.mxu0 0.0
      %672 = vmatpush2.msra.mxu0 0.0
      %673 = vmatprep.subr.mxu0 0.0
      %674 = vmatpush2.msra.mxu0 0.0
      %675 = vmatprep.subr.mxu0 0.0
      %676 = vmatpush2.msra.mxu0 0.0
      %677 = vmatprep.mubr.f32.mxu0 0.0
      %678 = vmatmul.mubr.f32.gmra.mxu0 %v462
      %v679 = vpop.f32.mrf.mxu0
      %v680 = vadd.f32 %v608, %v679
      %v681 = vpop.f32.mrf.mxu0
      %682 = vmatprep.mubr.f32.mxu0 0.0
      %683 = vmatmul.mubr.f32.gmra.mxu0 %v465
      %v684 = vpop.f32.mrf.mxu0
      %v685 = vadd.f32 %v608, %v684
      %v686 = vpop.f32.mrf.mxu0
      %687 = vmatprep.mubr.f32.mxu0 0.0
      %688 = vmatmul.mubr.f32.gmra.mxu0 %v468
      %v689 = vpop.f32.mrf.mxu0
      %v690 = vadd.f32 %v608, %v689
      %v691 = vpop.f32.mrf.mxu0
      %692 = vmatprep.mubr.f32.mxu0 0.0
      %693 = vmatmul.mubr.f32.gmra.mxu0 %v471
      %v694 = vpop.f32.mrf.mxu0
      %v695 = vadd.f32 %v608, %v694
      %v696 = vpop.f32.mrf.mxu0
      %697 = vmatprep.mubr.f32.mxu0 0.0
      %698 = vmatmul.mubr.f32.gmra.mxu0 %v474
      %v699 = vpop.f32.mrf.mxu0
      %v700 = vadd.f32 %v608, %v699
      %v701 = vpop.f32.mrf.mxu0
      %702 = vmatprep.mubr.f32.mxu0 0.0
      %703 = vmatmul.mubr.f32.gmra.mxu0 %v477
      %v704 = vpop.f32.mrf.mxu0
      %v705 = vadd.f32 %v608, %v704
      %v706 = vpop.f32.mrf.mxu0
      %707 = vmatprep.mubr.f32.mxu0 0.0
      %708 = vmatmul.mubr.f32.gmra.mxu0 %v480
      %v709 = vpop.f32.mrf.mxu0
      %v710 = vadd.f32 %v608, %v709
      %v711 = vpop.f32.mrf.mxu0
      %712 = vmatprep.mubr.f32.mxu0 0.0
      %713 = vmatmul.mubr.f32.gmra.mxu0 %v483
      %v714 = vpop.f32.mrf.mxu0
      %v715 = vadd.f32 %v608, %v714
      %v716 = vpop.f32.mrf.mxu0
      %717 = vdwg.mxu0
      %v718 = vtanh.pop %v680
      %v719 = vtanh.pop %v685
      %v720 = vtanh.pop %v690
      %v721 = vtanh.pop %v695
      %v722 = vtanh.pop %v700
      %v723 = vtanh.pop %v705
      %v724 = vtanh.pop %v710
      %v725 = vtanh.pop %v715
      %v726 = vld [vmem:[%s5] sm:$0xf]
      %v727 = vld [vmem:[%s6] sm:$0x1]
      %v729 = vlaneseq
      %v730 = vshrl.u32 %v729, 7
      %v731 = vsub.s32 0, %v730
      %v732 = vrot.slane %v727, %v731
      %v735 = vsel %vm485, %v726, 0
      %737 = vmatprep.subr.mxu0 0.0
      %738 = vmatpush1.msra.mxu0 0.0
      %739 = vmatprep.subr.mxu0 0.0
      %740 = vmatpush1.msra.mxu0 0.0
      %741 = vmatprep.subr.mxu0 0.0
      %742 = vmatpush1.msra.mxu0 0.0
      %743 = vmatprep.subr.mxu0 0.0
      %744 = vmatpush1.msra.mxu0 0.0
      %745 = vmatprep.subr.mxu0 0.0
      %746 = vmatpush1.msra.mxu0 0.0
      %747 = vmatprep.subr.mxu0 0.0
      %748 = vmatpush1.msra.mxu0 0.0
      %749 = vmatprep.subr.mxu0 0.0
      %750 = vmatpush1.msra.mxu0 0.0
      %751 = vmatprep.subr.mxu0 0.0
      %752 = vmatpush1.msra.mxu0 0.0
      %753 = vmatprep.subr.mxu0 0.0
      %754 = vmatpush1.msra.mxu0 0.0
      %755 = vmatprep.subr.mxu0 0.0
      %756 = vmatpush1.msra.mxu0 0.0
      %757 = vmatprep.subr.mxu0 0.0
      %758 = vmatpush1.msra.mxu0 0.0
      %759 = vmatprep.subr.mxu0 0.0
      %760 = vmatpush1.msra.mxu0 0.0
      %761 = vmatprep.subr.mxu0 0.0
      %762 = vmatpush1.msra.mxu0 0.0
      %763 = vmatprep.subr.mxu0 0.0
      %764 = vmatpush1.msra.mxu0 0.0
      %765 = vmatprep.subr.mxu0 0.0
      %766 = vmatpush1.msra.mxu0 0.0
      %767 = vmatprep.subr.mxu0 0.0
      %768 = vmatpush1.msra.mxu0 %v735
      %769 = vmatprep.subr.mxu0 0.0
      %770 = vmatpush2.msra.mxu0 0.0
      %771 = vmatprep.subr.mxu0 0.0
      %772 = vmatpush2.msra.mxu0 0.0
      %773 = vmatprep.subr.mxu0 0.0
      %774 = vmatpush2.msra.mxu0 0.0
      %775 = vmatprep.subr.mxu0 0.0
      %776 = vmatpush2.msra.mxu0 0.0
      %777 = vmatprep.subr.mxu0 0.0
      %778 = vmatpush2.msra.mxu0 0.0
      %779 = vmatprep.subr.mxu0 0.0
      %780 = vmatpush2.msra.mxu0 0.0
      %781 = vmatprep.subr.mxu0 0.0
      %782 = vmatpush2.msra.mxu0 0.0
      %783 = vmatprep.subr.mxu0 0.0
      %784 = vmatpush2.msra.mxu0 0.0
      %785 = vmatprep.subr.mxu0 0.0
      %786 = vmatpush2.msra.mxu0 0.0
      %787 = vmatprep.subr.mxu0 0.0
      %788 = vmatpush2.msra.mxu0 0.0
      %789 = vmatprep.subr.mxu0 0.0
      %790 = vmatpush2.msra.mxu0 0.0
      %791 = vmatprep.subr.mxu0 0.0
      %792 = vmatpush2.msra.mxu0 0.0
      %793 = vmatprep.subr.mxu0 0.0
      %794 = vmatpush2.msra.mxu0 0.0
      %795 = vmatprep.subr.mxu0 0.0
      %796 = vmatpush2.msra.mxu0 0.0
      %797 = vmatprep.subr.mxu0 0.0
      %798 = vmatpush2.msra.mxu0 0.0
      %799 = vmatprep.subr.mxu0 0.0
      %800 = vmatpush2.msra.mxu0 0.0
      %801 = vmatprep.mubr.f32.mxu0 0.0
      %802 = vmatmul.mubr.f32.gmra.mxu0 %v462
      %v803 = vpop.f32.mrf.mxu0
      %v804 = vadd.f32 %v732, %v803
      %v805 = vpop.f32.mrf.mxu0
      %806 = vmatprep.mubr.f32.mxu0 0.0
      %807 = vmatmul.mubr.f32.gmra.mxu0 %v465
      %v808 = vpop.f32.mrf.mxu0
      %v809 = vadd.f32 %v732, %v808
      %v810 = vpop.f32.mrf.mxu0
      %811 = vmatprep.mubr.f32.mxu0 0.0
      %812 = vmatmul.mubr.f32.gmra.mxu0 %v468
      %v813 = vpop.f32.mrf.mxu0
      %v814 = vadd.f32 %v732, %v813
      %v815 = vpop.f32.mrf.mxu0
      %816 = vmatprep.mubr.f32.mxu0 0.0
      %817 = vmatmul.mubr.f32.gmra.mxu0 %v471
      %v818 = vpop.f32.mrf.mxu0
      %v819 = vadd.f32 %v732, %v818
      %v820 = vpop.f32.mrf.mxu0
      %821 = vmatprep.mubr.f32.mxu0 0.0
      %822 = vmatmul.mubr.f32.gmra.mxu0 %v474
      %v823 = vpop.f32.mrf.mxu0
      %v824 = vadd.f32 %v732, %v823
      %v825 = vpop.f32.mrf.mxu0
      %826 = vmatprep.mubr.f32.mxu0 0.0
      %827 = vmatmul.mubr.f32.gmra.mxu0 %v477
      %v828 = vpop.f32.mrf.mxu0
      %v829 = vadd.f32 %v732, %v828
      %v830 = vpop.f32.mrf.mxu0
      %831 = vmatprep.mubr.f32.mxu0 0.0
      %832 = vmatmul.mubr.f32.gmra.mxu0 %v480
      %v833 = vpop.f32.mrf.mxu0
      %v834 = vadd.f32 %v732, %v833
      %v835 = vpop.f32.mrf.mxu0
      %836 = vmatprep.mubr.f32.mxu0 0.0
      %837 = vmatmul.mubr.f32.gmra.mxu0 %v483
      %v838 = vpop.f32.mrf.mxu0
      %v839 = vadd.f32 %v732, %v838
      %v840 = vpop.f32.mrf.mxu0
      %841 = vdwg.mxu0
      %v842 = vsub.f32 0.0, %v804
      %v843 = vsub.f32 0.0, %v809
      %v844 = vsub.f32 0.0, %v814
      %v845 = vsub.f32 0.0, %v819
      %v846 = vsub.f32 0.0, %v824
      %v847 = vsub.f32 0.0, %v829
      %v848 = vsub.f32 0.0, %v834
      %v849 = vsub.f32 0.0, %v839
      %v850 = vmul.f32 %v842, 1.442695
      %v851 = vpow.pop %v850
      %v852 = vmul.f32 %v843, 1.442695
      %v853 = vpow.pop %v852
      %v854 = vmul.f32 %v844, 1.442695
      %v855 = vpow.pop %v854
      %v856 = vmul.f32 %v845, 1.442695
      %v857 = vpow.pop %v856
      %v858 = vmul.f32 %v846, 1.442695
      %v859 = vpow.pop %v858
      %v860 = vmul.f32 %v847, 1.442695
      %v861 = vpow.pop %v860
      %v862 = vmul.f32 %v848, 1.442695
      %v863 = vpow.pop %v862
      %v864 = vmul.f32 %v849, 1.442695
      %v865 = vpow.pop %v864
      %v866 = vadd.f32 %v851, 1.0
      %v867 = vadd.f32 %v853, 1.0
      %v868 = vadd.f32 %v855, 1.0
      %v869 = vadd.f32 %v857, 1.0
      %v870 = vadd.f32 %v859, 1.0
      %v871 = vadd.f32 %v861, 1.0
      %v872 = vadd.f32 %v863, 1.0
      %v873 = vadd.f32 %v865, 1.0
      %v874 = vrcp.pop %v866
      %v875 = vmul.f32 1.0, %v874
      %v876 = vrcp.pop %v867
      %v877 = vmul.f32 1.0, %v876
      %v878 = vrcp.pop %v868
      %v879 = vmul.f32 1.0, %v878
      %v880 = vrcp.pop %v869
      %v881 = vmul.f32 1.0, %v880
      %v882 = vrcp.pop %v870
      %v883 = vmul.f32 1.0, %v882
      %v884 = vrcp.pop %v871
      %v885 = vmul.f32 1.0, %v884
      %v886 = vrcp.pop %v872
      %v887 = vmul.f32 1.0, %v886
      %v888 = vrcp.pop %v873
      %v889 = vmul.f32 1.0, %v888
      %v890 = vmul.f32 %v875, %v594
      %v891 = vmul.f32 %v877, %v595
      %v892 = vmul.f32 %v879, %v596
      %v893 = vmul.f32 %v881, %v597
      %v894 = vmul.f32 %v883, %v598
      %v895 = vmul.f32 %v885, %v599
      %v896 = vmul.f32 %v887, %v600
      %v897 = vmul.f32 %v889, %v601
      %v898 = vsub.f32 1.0, %v875
      %v899 = vsub.f32 1.0, %v877
      %v900 = vsub.f32 1.0, %v879
      %v901 = vsub.f32 1.0, %v881
      %v902 = vsub.f32 1.0, %v883
      %v903 = vsub.f32 1.0, %v885
      %v904 = vsub.f32 1.0, %v887
      %v905 = vsub.f32 1.0, %v889
      %v906 = vmul.f32 %v898, %v718
      %v907 = vmul.f32 %v899, %v719
      %v908 = vmul.f32 %v900, %v720
      %v909 = vmul.f32 %v901, %v721
      %v910 = vmul.f32 %v902, %v722
      %v911 = vmul.f32 %v903, %v723
      %v912 = vmul.f32 %v904, %v724
      %v913 = vmul.f32 %v905, %v725
      %v914 = vadd.f32 %v890, %v906
      %v915 = vadd.f32 %v891, %v907
      %v916 = vadd.f32 %v892, %v908
      %v917 = vadd.f32 %v893, %v909
      %v918 = vadd.f32 %v894, %v910
      %v919 = vadd.f32 %v895, %v911
      %v920 = vadd.f32 %v896, %v912
      %v921 = vadd.f32 %v897, %v913
      %v922 = vld [vmem:[%s7] sm:$0xff]
      %v923 = vld [vmem:[%s7 + $0x8] sm:$0xff]
      %v924 = vld [vmem:[%s7 + $0x10] sm:$0xff]
      %v925 = vld [vmem:[%s7 + $0x18] sm:$0xff]
      %v926 = vld [vmem:[%s7 + $0x20] sm:$0xff]
      %v927 = vld [vmem:[%s7 + $0x28] sm:$0xff]
      %v928 = vld [vmem:[%s7 + $0x30] sm:$0xff]
      %v929 = vld [vmem:[%s7 + $0x38] sm:$0xff]
      %v930 = vld [vmem:[%s7 + $0x40] sm:$0xff]
      %v931 = vld [vmem:[%s7 + $0x48] sm:$0xff]
      %v932 = vld [vmem:[%s7 + $0x50] sm:$0xff]
      %v933 = vld [vmem:[%s7 + $0x58] sm:$0xff]
      %v934 = vld [vmem:[%s7 + $0x60] sm:$0xff]
      %v935 = vld [vmem:[%s7 + $0x68] sm:$0xff]
      %v936 = vld [vmem:[%s7 + $0x70] sm:$0xff]
      %v937 = vld [vmem:[%s7 + $0x78] sm:$0xff]
      %v938 = vld [vmem:[%s8] sm:$0x1]
      %v940 = vlaneseq
      %v941 = vshrl.u32 %v940, 7
      %v942 = vsub.s32 0, %v941
      %v943 = vrot.slane %v938, %v942
      %945 = vmatprep.subr.mxu0 0.0
      %946 = vmatpush1.msra.mxu0 %v937
      %947 = vmatprep.subr.mxu0 0.0
      %948 = vmatpush1.msra.mxu0 %v936
      %949 = vmatprep.subr.mxu0 0.0
      %950 = vmatpush1.msra.mxu0 %v935
      %951 = vmatprep.subr.mxu0 0.0
      %952 = vmatpush1.msra.mxu0 %v934
      %953 = vmatprep.subr.mxu0 0.0
      %954 = vmatpush1.msra.mxu0 %v933
      %955 = vmatprep.subr.mxu0 0.0
      %956 = vmatpush1.msra.mxu0 %v932
      %957 = vmatprep.subr.mxu0 0.0
      %958 = vmatpush1.msra.mxu0 %v931
      %959 = vmatprep.subr.mxu0 0.0
      %960 = vmatpush1.msra.mxu0 %v930
      %961 = vmatprep.subr.mxu0 0.0
      %962 = vmatpush1.msra.mxu0 %v929
      %963 = vmatprep.subr.mxu0 0.0
      %964 = vmatpush1.msra.mxu0 %v928
      %965 = vmatprep.subr.mxu0 0.0
      %966 = vmatpush1.msra.mxu0 %v927
      %967 = vmatprep.subr.mxu0 0.0
      %968 = vmatpush1.msra.mxu0 %v926
      %969 = vmatprep.subr.mxu0 0.0
      %970 = vmatpush1.msra.mxu0 %v925
      %971 = vmatprep.subr.mxu0 0.0
      %972 = vmatpush1.msra.mxu0 %v924
      %973 = vmatprep.subr.mxu0 0.0
      %974 = vmatpush1.msra.mxu0 %v923
      %975 = vmatprep.subr.mxu0 0.0
      %976 = vmatpush1.msra.mxu0 %v922
      %977 = vmatprep.subr.mxu0 0.0
      %978 = vmatpush2.msra.mxu0 0.0
      %979 = vmatprep.subr.mxu0 0.0
      %980 = vmatpush2.msra.mxu0 0.0
      %981 = vmatprep.subr.mxu0 0.0
      %982 = vmatpush2.msra.mxu0 0.0
      %983 = vmatprep.subr.mxu0 0.0
      %984 = vmatpush2.msra.mxu0 0.0
      %985 = vmatprep.subr.mxu0 0.0
      %986 = vmatpush2.msra.mxu0 0.0
      %987 = vmatprep.subr.mxu0 0.0
      %988 = vmatpush2.msra.mxu0 0.0
      %989 = vmatprep.subr.mxu0 0.0
      %990 = vmatpush2.msra.mxu0 0.0
      %991 = vmatprep.subr.mxu0 0.0
      %992 = vmatpush2.msra.mxu0 0.0
      %993 = vmatprep.subr.mxu0 0.0
      %994 = vmatpush2.msra.mxu0 0.0
      %995 = vmatprep.subr.mxu0 0.0
      %996 = vmatpush2.msra.mxu0 0.0
      %997 = vmatprep.subr.mxu0 0.0
      %998 = vmatpush2.msra.mxu0 0.0
      %999 = vmatprep.subr.mxu0 0.0
      %1000 = vmatpush2.msra.mxu0 0.0
      %1001 = vmatprep.subr.mxu0 0.0
      %1002 = vmatpush2.msra.mxu0 0.0
      %1003 = vmatprep.subr.mxu0 0.0
      %1004 = vmatpush2.msra.mxu0 0.0
      %1005 = vmatprep.subr.mxu0 0.0
      %1006 = vmatpush2.msra.mxu0 0.0
      %1007 = vmatprep.subr.mxu0 0.0
      %1008 = vmatpush2.msra.mxu0 0.0
      %1009 = vmatprep.mubr.f32.mxu0 0.0
      %1010 = vmatmul.mubr.f32.gmra.mxu0 %v914
      %v1011 = vpop.f32.mrf.mxu0
      %v1012 = vadd.f32 %v943, %v1011
      %v1013 = vpop.f32.mrf.mxu0
      %1014 = vmatprep.mubr.f32.mxu0 0.0
      %1015 = vmatmul.mubr.f32.gmra.mxu0 %v915
      %v1016 = vpop.f32.mrf.mxu0
      %v1017 = vadd.f32 %v943, %v1016
      %v1018 = vpop.f32.mrf.mxu0
      %1019 = vmatprep.mubr.f32.mxu0 0.0
      %1020 = vmatmul.mubr.f32.gmra.mxu0 %v916
      %v1021 = vpop.f32.mrf.mxu0
      %v1022 = vadd.f32 %v943, %v1021
      %v1023 = vpop.f32.mrf.mxu0
      %1024 = vmatprep.mubr.f32.mxu0 0.0
      %1025 = vmatmul.mubr.f32.gmra.mxu0 %v917
      %v1026 = vpop.f32.mrf.mxu0
      %v1027 = vadd.f32 %v943, %v1026
      %v1028 = vpop.f32.mrf.mxu0
      %1029 = vmatprep.mubr.f32.mxu0 0.0
      %1030 = vmatmul.mubr.f32.gmra.mxu0 %v918
      %v1031 = vpop.f32.mrf.mxu0
      %v1032 = vadd.f32 %v943, %v1031
      %v1033 = vpop.f32.mrf.mxu0
      %1034 = vmatprep.mubr.f32.mxu0 0.0
      %1035 = vmatmul.mubr.f32.gmra.mxu0 %v919
      %v1036 = vpop.f32.mrf.mxu0
      %v1037 = vadd.f32 %v943, %v1036
      %v1038 = vpop.f32.mrf.mxu0
      %1039 = vmatprep.mubr.f32.mxu0 0.0
      %1040 = vmatmul.mubr.f32.gmra.mxu0 %v920
      %v1041 = vpop.f32.mrf.mxu0
      %v1042 = vadd.f32 %v943, %v1041
      %v1043 = vpop.f32.mrf.mxu0
      %1044 = vmatprep.mubr.f32.mxu0 0.0
      %1045 = vmatmul.mubr.f32.gmra.mxu0 %v921
      %v1046 = vpop.f32.mrf.mxu0
      %v1047 = vadd.f32 %v943, %v1046
      %v1048 = vpop.f32.mrf.mxu0
      %1049 = vdwg.mxu0
      %v1050 = vsub.f32 0.0, %v1012
      %v1051 = vsub.f32 0.0, %v1017
      %v1052 = vsub.f32 0.0, %v1022
      %v1053 = vsub.f32 0.0, %v1027
      %v1054 = vsub.f32 0.0, %v1032
      %v1055 = vsub.f32 0.0, %v1037
      %v1056 = vsub.f32 0.0, %v1042
      %v1057 = vsub.f32 0.0, %v1047
      %v1058 = vmul.f32 %v1050, 1.442695
      %v1059 = vpow.pop %v1058
      %v1060 = vmul.f32 %v1051, 1.442695
      %v1061 = vpow.pop %v1060
      %v1062 = vmul.f32 %v1052, 1.442695
      %v1063 = vpow.pop %v1062
      %v1064 = vmul.f32 %v1053, 1.442695
      %v1065 = vpow.pop %v1064
      %v1066 = vmul.f32 %v1054, 1.442695
      %v1067 = vpow.pop %v1066
      %v1068 = vmul.f32 %v1055, 1.442695
      %v1069 = vpow.pop %v1068
      %v1070 = vmul.f32 %v1056, 1.442695
      %v1071 = vpow.pop %v1070
      %v1072 = vmul.f32 %v1057, 1.442695
      %v1073 = vpow.pop %v1072
      %v1074 = vadd.f32 %v1059, 1.0
      %v1075 = vadd.f32 %v1061, 1.0
      %v1076 = vadd.f32 %v1063, 1.0
      %v1077 = vadd.f32 %v1065, 1.0
      %v1078 = vadd.f32 %v1067, 1.0
      %v1079 = vadd.f32 %v1069, 1.0
      %v1080 = vadd.f32 %v1071, 1.0
      %v1081 = vadd.f32 %v1073, 1.0
      %v1082 = vrcp.pop %v1074
      %v1083 = vmul.f32 1.0, %v1082
      %v1084 = vrcp.pop %v1075
      %v1085 = vmul.f32 1.0, %v1084
      %v1086 = vrcp.pop %v1076
      %v1087 = vmul.f32 1.0, %v1086
      %v1088 = vrcp.pop %v1077
      %v1089 = vmul.f32 1.0, %v1088
      %v1090 = vrcp.pop %v1078
      %v1091 = vmul.f32 1.0, %v1090
      %v1092 = vrcp.pop %v1079
      %v1093 = vmul.f32 1.0, %v1092
      %v1094 = vrcp.pop %v1080
      %v1095 = vmul.f32 1.0, %v1094
      %v1096 = vrcp.pop %v1081
      %v1097 = vmul.f32 1.0, %v1096
      %v1098 = vmul.f32 %v1083, %v594
      %v1099 = vmul.f32 %v1085, %v595
      %v1100 = vmul.f32 %v1087, %v596
      %v1101 = vmul.f32 %v1089, %v597
      %v1102 = vmul.f32 %v1091, %v598
      %v1103 = vmul.f32 %v1093, %v599
      %v1104 = vmul.f32 %v1095, %v600
      %v1105 = vmul.f32 %v1097, %v601
      %v1106 = vsub.f32 1.0, %v1083
      %v1107 = vsub.f32 1.0, %v1085
      %v1108 = vsub.f32 1.0, %v1087
      %v1109 = vsub.f32 1.0, %v1089
      %v1110 = vsub.f32 1.0, %v1091
      %v1111 = vsub.f32 1.0, %v1093
      %v1112 = vsub.f32 1.0, %v1095
      %v1113 = vsub.f32 1.0, %v1097
      %v1114 = vmul.f32 %v1106, %v718
      %v1115 = vmul.f32 %v1107, %v719
      %v1116 = vmul.f32 %v1108, %v720
      %v1117 = vmul.f32 %v1109, %v721
      %v1118 = vmul.f32 %v1110, %v722
      %v1119 = vmul.f32 %v1111, %v723
      %v1120 = vmul.f32 %v1112, %v724
      %v1121 = vmul.f32 %v1113, %v725
      %v1122 = vadd.f32 %v1098, %v1114
      %v1123 = vadd.f32 %v1099, %v1115
      %v1124 = vadd.f32 %v1100, %v1116
      %v1125 = vadd.f32 %v1101, %v1117
      %v1126 = vadd.f32 %v1102, %v1118
      %v1127 = vadd.f32 %v1103, %v1119
      %v1128 = vadd.f32 %v1104, %v1120
      %v1129 = vadd.f32 %v1105, %v1121
      %v1130 = vld [vmem:[%s9] sm:$0xff]
      %v1131 = vld [vmem:[%s9 + $0x8] sm:$0xff]
      %v1132 = vld [vmem:[%s9 + $0x10] sm:$0xff]
      %v1133 = vld [vmem:[%s9 + $0x18] sm:$0xff]
      %v1134 = vld [vmem:[%s9 + $0x20] sm:$0xff]
      %v1135 = vld [vmem:[%s9 + $0x28] sm:$0xff]
      %v1136 = vld [vmem:[%s9 + $0x30] sm:$0xff]
      %v1137 = vld [vmem:[%s9 + $0x38] sm:$0xff]
      %v1138 = vld [vmem:[%s9 + $0x40] sm:$0xff]
      %v1139 = vld [vmem:[%s9 + $0x48] sm:$0xff]
      %v1140 = vld [vmem:[%s9 + $0x50] sm:$0xff]
      %v1141 = vld [vmem:[%s9 + $0x58] sm:$0xff]
      %v1142 = vld [vmem:[%s9 + $0x60] sm:$0xff]
      %v1143 = vld [vmem:[%s9 + $0x68] sm:$0xff]
      %v1144 = vld [vmem:[%s9 + $0x70] sm:$0xff]
      %v1145 = vld [vmem:[%s9 + $0x78] sm:$0xff]
      %v1146 = vld [vmem:[%s10] sm:$0x1]
      %v1148 = vlaneseq
      %v1149 = vshrl.u32 %v1148, 7
      %v1150 = vsub.s32 0, %v1149
      %v1151 = vrot.slane %v1146, %v1150
      %1153 = vmatprep.subr.mxu0 0.0
      %1154 = vmatpush1.msra.mxu0 %v1145
      %1155 = vmatprep.subr.mxu0 0.0
      %1156 = vmatpush1.msra.mxu0 %v1144
      %1157 = vmatprep.subr.mxu0 0.0
      %1158 = vmatpush1.msra.mxu0 %v1143
      %1159 = vmatprep.subr.mxu0 0.0
      %1160 = vmatpush1.msra.mxu0 %v1142
      %1161 = vmatprep.subr.mxu0 0.0
      %1162 = vmatpush1.msra.mxu0 %v1141
      %1163 = vmatprep.subr.mxu0 0.0
      %1164 = vmatpush1.msra.mxu0 %v1140
      %1165 = vmatprep.subr.mxu0 0.0
      %1166 = vmatpush1.msra.mxu0 %v1139
      %1167 = vmatprep.subr.mxu0 0.0
      %1168 = vmatpush1.msra.mxu0 %v1138
      %1169 = vmatprep.subr.mxu0 0.0
      %1170 = vmatpush1.msra.mxu0 %v1137
      %1171 = vmatprep.subr.mxu0 0.0
      %1172 = vmatpush1.msra.mxu0 %v1136
      %1173 = vmatprep.subr.mxu0 0.0
      %1174 = vmatpush1.msra.mxu0 %v1135
      %1175 = vmatprep.subr.mxu0 0.0
      %1176 = vmatpush1.msra.mxu0 %v1134
      %1177 = vmatprep.subr.mxu0 0.0
      %1178 = vmatpush1.msra.mxu0 %v1133
      %1179 = vmatprep.subr.mxu0 0.0
      %1180 = vmatpush1.msra.mxu0 %v1132
      %1181 = vmatprep.subr.mxu0 0.0
      %1182 = vmatpush1.msra.mxu0 %v1131
      %1183 = vmatprep.subr.mxu0 0.0
      %1184 = vmatpush1.msra.mxu0 %v1130
      %1185 = vmatprep.subr.mxu0 0.0
      %1186 = vmatpush2.msra.mxu0 0.0
      %1187 = vmatprep.subr.mxu0 0.0
      %1188 = vmatpush2.msra.mxu0 0.0
      %1189 = vmatprep.subr.mxu0 0.0
      %1190 = vmatpush2.msra.mxu0 0.0
      %1191 = vmatprep.subr.mxu0 0.0
      %1192 = vmatpush2.msra.mxu0 0.0
      %1193 = vmatprep.subr.mxu0 0.0
      %1194 = vmatpush2.msra.mxu0 0.0
      %1195 = vmatprep.subr.mxu0 0.0
      %1196 = vmatpush2.msra.mxu0 0.0
      %1197 = vmatprep.subr.mxu0 0.0
      %1198 = vmatpush2.msra.mxu0 0.0
      %1199 = vmatprep.subr.mxu0 0.0
      %1200 = vmatpush2.msra.mxu0 0.0
      %1201 = vmatprep.subr.mxu0 0.0
      %1202 = vmatpush2.msra.mxu0 0.0
      %1203 = vmatprep.subr.mxu0 0.0
      %1204 = vmatpush2.msra.mxu0 0.0
      %1205 = vmatprep.subr.mxu0 0.0
      %1206 = vmatpush2.msra.mxu0 0.0
      %1207 = vmatprep.subr.mxu0 0.0
      %1208 = vmatpush2.msra.mxu0 0.0
      %1209 = vmatprep.subr.mxu0 0.0
      %1210 = vmatpush2.msra.mxu0 0.0
      %1211 = vmatprep.subr.mxu0 0.0
      %1212 = vmatpush2.msra.mxu0 0.0
      %1213 = vmatprep.subr.mxu0 0.0
      %1214 = vmatpush2.msra.mxu0 0.0
      %1215 = vmatprep.subr.mxu0 0.0
      %1216 = vmatpush2.msra.mxu0 0.0
      %1217 = vmatprep.mubr.f32.mxu0 0.0
      %1218 = vmatmul.mubr.f32.gmra.mxu0 %v1122
      %v1219 = vpop.f32.mrf.mxu0
      %v1220 = vadd.f32 %v1151, %v1219
      %v1221 = vpop.f32.mrf.mxu0
      %1222 = vmatprep.mubr.f32.mxu0 0.0
      %1223 = vmatmul.mubr.f32.gmra.mxu0 %v1123
      %v1224 = vpop.f32.mrf.mxu0
      %v1225 = vadd.f32 %v1151, %v1224
      %v1226 = vpop.f32.mrf.mxu0
      %1227 = vmatprep.mubr.f32.mxu0 0.0
      %1228 = vmatmul.mubr.f32.gmra.mxu0 %v1124
      %v1229 = vpop.f32.mrf.mxu0
      %v1230 = vadd.f32 %v1151, %v1229
      %v1231 = vpop.f32.mrf.mxu0
      %1232 = vmatprep.mubr.f32.mxu0 0.0
      %1233 = vmatmul.mubr.f32.gmra.mxu0 %v1125
      %v1234 = vpop.f32.mrf.mxu0
      %v1235 = vadd.f32 %v1151, %v1234
      %v1236 = vpop.f32.mrf.mxu0
      %1237 = vmatprep.mubr.f32.mxu0 0.0
      %1238 = vmatmul.mubr.f32.gmra.mxu0 %v1126
      %v1239 = vpop.f32.mrf.mxu0
      %v1240 = vadd.f32 %v1151, %v1239
      %v1241 = vpop.f32.mrf.mxu0
      %1242 = vmatprep.mubr.f32.mxu0 0.0
      %1243 = vmatmul.mubr.f32.gmra.mxu0 %v1127
      %v1244 = vpop.f32.mrf.mxu0
      %v1245 = vadd.f32 %v1151, %v1244
      %v1246 = vpop.f32.mrf.mxu0
      %1247 = vmatprep.mubr.f32.mxu0 0.0
      %1248 = vmatmul.mubr.f32.gmra.mxu0 %v1128
      %v1249 = vpop.f32.mrf.mxu0
      %v1250 = vadd.f32 %v1151, %v1249
      %v1251 = vpop.f32.mrf.mxu0
      %1252 = vmatprep.mubr.f32.mxu0 0.0
      %1253 = vmatmul.mubr.f32.gmra.mxu0 %v1129
      %v1254 = vpop.f32.mrf.mxu0
      %v1255 = vadd.f32 %v1151, %v1254
      %v1256 = vpop.f32.mrf.mxu0
      %1257 = vdwg.mxu0
      %v1258 = vsub.f32 0.0, %v1220
      %v1259 = vsub.f32 0.0, %v1225
      %v1260 = vsub.f32 0.0, %v1230
      %v1261 = vsub.f32 0.0, %v1235
      %v1262 = vsub.f32 0.0, %v1240
      %v1263 = vsub.f32 0.0, %v1245
      %v1264 = vsub.f32 0.0, %v1250
      %v1265 = vsub.f32 0.0, %v1255
      %v1266 = vmul.f32 %v1258, 1.442695
      %v1267 = vpow.pop %v1266
      %v1268 = vmul.f32 %v1259, 1.442695
      %v1269 = vpow.pop %v1268
      %v1270 = vmul.f32 %v1260, 1.442695
      %v1271 = vpow.pop %v1270
      %v1272 = vmul.f32 %v1261, 1.442695
      %v1273 = vpow.pop %v1272
      %v1274 = vmul.f32 %v1262, 1.442695
      %v1275 = vpow.pop %v1274
      %v1276 = vmul.f32 %v1263, 1.442695
      %v1277 = vpow.pop %v1276
      %v1278 = vmul.f32 %v1264, 1.442695
      %v1279 = vpow.pop %v1278
      %v1280 = vmul.f32 %v1265, 1.442695
      %v1281 = vpow.pop %v1280
      %v1282 = vadd.f32 %v1267, 1.0
      %v1283 = vadd.f32 %v1269, 1.0
      %v1284 = vadd.f32 %v1271, 1.0
      %v1285 = vadd.f32 %v1273, 1.0
      %v1286 = vadd.f32 %v1275, 1.0
      %v1287 = vadd.f32 %v1277, 1.0
      %v1288 = vadd.f32 %v1279, 1.0
      %v1289 = vadd.f32 %v1281, 1.0
      %v1290 = vrcp.pop %v1282
      %v1291 = vmul.f32 1.0, %v1290
      %v1292 = vrcp.pop %v1283
      %v1293 = vmul.f32 1.0, %v1292
      %v1294 = vrcp.pop %v1284
      %v1295 = vmul.f32 1.0, %v1294
      %v1296 = vrcp.pop %v1285
      %v1297 = vmul.f32 1.0, %v1296
      %v1298 = vrcp.pop %v1286
      %v1299 = vmul.f32 1.0, %v1298
      %v1300 = vrcp.pop %v1287
      %v1301 = vmul.f32 1.0, %v1300
      %v1302 = vrcp.pop %v1288
      %v1303 = vmul.f32 1.0, %v1302
      %v1304 = vrcp.pop %v1289
      %v1305 = vmul.f32 1.0, %v1304
      %v1306 = vmul.f32 %v1291, %v594
      %v1307 = vmul.f32 %v1293, %v595
      %v1308 = vmul.f32 %v1295, %v596
      %v1309 = vmul.f32 %v1297, %v597
      %v1310 = vmul.f32 %v1299, %v598
      %v1311 = vmul.f32 %v1301, %v599
      %v1312 = vmul.f32 %v1303, %v600
      %v1313 = vmul.f32 %v1305, %v601
      %v1314 = vsub.f32 1.0, %v1291
      %v1315 = vsub.f32 1.0, %v1293
      %v1316 = vsub.f32 1.0, %v1295
      %v1317 = vsub.f32 1.0, %v1297
      %v1318 = vsub.f32 1.0, %v1299
      %v1319 = vsub.f32 1.0, %v1301
      %v1320 = vsub.f32 1.0, %v1303
      %v1321 = vsub.f32 1.0, %v1305
      %v1322 = vmul.f32 %v1314, %v718
      %v1323 = vmul.f32 %v1315, %v719
      %v1324 = vmul.f32 %v1316, %v720
      %v1325 = vmul.f32 %v1317, %v721
      %v1326 = vmul.f32 %v1318, %v722
      %v1327 = vmul.f32 %v1319, %v723
      %v1328 = vmul.f32 %v1320, %v724
      %v1329 = vmul.f32 %v1321, %v725
      %v1330 = vadd.f32 %v1306, %v1322
      %v1331 = vadd.f32 %v1307, %v1323
      %v1332 = vadd.f32 %v1308, %v1324
      %v1333 = vadd.f32 %v1309, %v1325
      %v1334 = vadd.f32 %v1310, %v1326
      %v1335 = vadd.f32 %v1311, %v1327
      %v1336 = vadd.f32 %v1312, %v1328
      %v1337 = vadd.f32 %v1313, %v1329
      %v1338 = vld [vmem:[%s11] sm:$0xff]
      %v1339 = vld [vmem:[%s11 + $0x8] sm:$0xff]
      %v1340 = vld [vmem:[%s11 + $0x10] sm:$0xff]
      %v1341 = vld [vmem:[%s11 + $0x18] sm:$0xff]
      %v1342 = vld [vmem:[%s11 + $0x20] sm:$0xff]
      %v1343 = vld [vmem:[%s11 + $0x28] sm:$0xff]
      %v1344 = vld [vmem:[%s11 + $0x30] sm:$0xff]
      %v1345 = vld [vmem:[%s11 + $0x38] sm:$0xff]
      %v1346 = vld [vmem:[%s11 + $0x40] sm:$0xff]
      %v1347 = vld [vmem:[%s11 + $0x48] sm:$0xff]
      %v1348 = vld [vmem:[%s11 + $0x50] sm:$0xff]
      %v1349 = vld [vmem:[%s11 + $0x58] sm:$0xff]
      %v1350 = vld [vmem:[%s11 + $0x60] sm:$0xff]
      %v1351 = vld [vmem:[%s11 + $0x68] sm:$0xff]
      %v1352 = vld [vmem:[%s11 + $0x70] sm:$0xff]
      %v1353 = vld [vmem:[%s11 + $0x78] sm:$0xff]
      %v1354 = vld [vmem:[%s12] sm:$0x1]
      %v1356 = vlaneseq
      %v1357 = vshrl.u32 %v1356, 7
      %v1358 = vsub.s32 0, %v1357
      %v1359 = vrot.slane %v1354, %v1358
      %1361 = vmatprep.subr.mxu0 0.0
      %1362 = vmatpush1.msra.mxu0 %v1353
      %1363 = vmatprep.subr.mxu0 0.0
      %1364 = vmatpush1.msra.mxu0 %v1352
      %1365 = vmatprep.subr.mxu0 0.0
      %1366 = vmatpush1.msra.mxu0 %v1351
      %1367 = vmatprep.subr.mxu0 0.0
      %1368 = vmatpush1.msra.mxu0 %v1350
      %1369 = vmatprep.subr.mxu0 0.0
      %1370 = vmatpush1.msra.mxu0 %v1349
      %1371 = vmatprep.subr.mxu0 0.0
      %1372 = vmatpush1.msra.mxu0 %v1348
      %1373 = vmatprep.subr.mxu0 0.0
      %1374 = vmatpush1.msra.mxu0 %v1347
      %1375 = vmatprep.subr.mxu0 0.0
      %1376 = vmatpush1.msra.mxu0 %v1346
      %1377 = vmatprep.subr.mxu0 0.0
      %1378 = vmatpush1.msra.mxu0 %v1345
      %1379 = vmatprep.subr.mxu0 0.0
      %1380 = vmatpush1.msra.mxu0 %v1344
      %1381 = vmatprep.subr.mxu0 0.0
      %1382 = vmatpush1.msra.mxu0 %v1343
      %1383 = vmatprep.subr.mxu0 0.0
      %1384 = vmatpush1.msra.mxu0 %v1342
      %1385 = vmatprep.subr.mxu0 0.0
      %1386 = vmatpush1.msra.mxu0 %v1341
      %1387 = vmatprep.subr.mxu0 0.0
      %1388 = vmatpush1.msra.mxu0 %v1340
      %1389 = vmatprep.subr.mxu0 0.0
      %1390 = vmatpush1.msra.mxu0 %v1339
      %1391 = vmatprep.subr.mxu0 0.0
      %1392 = vmatpush1.msra.mxu0 %v1338
      %1393 = vmatprep.subr.mxu0 0.0
      %1394 = vmatpush2.msra.mxu0 0.0
      %1395 = vmatprep.subr.mxu0 0.0
      %1396 = vmatpush2.msra.mxu0 0.0
      %1397 = vmatprep.subr.mxu0 0.0
      %1398 = vmatpush2.msra.mxu0 0.0
      %1399 = vmatprep.subr.mxu0 0.0
      %1400 = vmatpush2.msra.mxu0 0.0
      %1401 = vmatprep.subr.mxu0 0.0
      %1402 = vmatpush2.msra.mxu0 0.0
      %1403 = vmatprep.subr.mxu0 0.0
      %1404 = vmatpush2.msra.mxu0 0.0
      %1405 = vmatprep.subr.mxu0 0.0
      %1406 = vmatpush2.msra.mxu0 0.0
      %1407 = vmatprep.subr.mxu0 0.0
      %1408 = vmatpush2.msra.mxu0 0.0
      %1409 = vmatprep.subr.mxu0 0.0
      %1410 = vmatpush2.msra.mxu0 0.0
      %1411 = vmatprep.subr.mxu0 0.0
      %1412 = vmatpush2.msra.mxu0 0.0
      %1413 = vmatprep.subr.mxu0 0.0
      %1414 = vmatpush2.msra.mxu0 0.0
      %1415 = vmatprep.subr.mxu0 0.0
      %1416 = vmatpush2.msra.mxu0 0.0
      %1417 = vmatprep.subr.mxu0 0.0
      %1418 = vmatpush2.msra.mxu0 0.0
      %1419 = vmatprep.subr.mxu0 0.0
      %1420 = vmatpush2.msra.mxu0 0.0
      %1421 = vmatprep.subr.mxu0 0.0
      %1422 = vmatpush2.msra.mxu0 0.0
      %1423 = vmatprep.subr.mxu0 0.0
      %1424 = vmatpush2.msra.mxu0 0.0
      %1425 = vmatprep.mubr.f32.mxu0 0.0
      %1426 = vmatmul.mubr.f32.gmra.mxu0 %v1330
      %v1427 = vpop.f32.mrf.mxu0
      %v1428 = vadd.f32 %v1359, %v1427
      %v1429 = vpop.f32.mrf.mxu0
      %1430 = vmatprep.mubr.f32.mxu0 0.0
      %1431 = vmatmul.mubr.f32.gmra.mxu0 %v1331
      %v1432 = vpop.f32.mrf.mxu0
      %v1433 = vadd.f32 %v1359, %v1432
      %v1434 = vpop.f32.mrf.mxu0
      %1435 = vmatprep.mubr.f32.mxu0 0.0
      %1436 = vmatmul.mubr.f32.gmra.mxu0 %v1332
      %v1437 = vpop.f32.mrf.mxu0
      %v1438 = vadd.f32 %v1359, %v1437
      %v1439 = vpop.f32.mrf.mxu0
      %1440 = vmatprep.mubr.f32.mxu0 0.0
      %1441 = vmatmul.mubr.f32.gmra.mxu0 %v1333
      %v1442 = vpop.f32.mrf.mxu0
      %v1443 = vadd.f32 %v1359, %v1442
      %v1444 = vpop.f32.mrf.mxu0
      %1445 = vmatprep.mubr.f32.mxu0 0.0
      %1446 = vmatmul.mubr.f32.gmra.mxu0 %v1334
      %v1447 = vpop.f32.mrf.mxu0
      %v1448 = vadd.f32 %v1359, %v1447
      %v1449 = vpop.f32.mrf.mxu0
      %1450 = vmatprep.mubr.f32.mxu0 0.0
      %1451 = vmatmul.mubr.f32.gmra.mxu0 %v1335
      %v1452 = vpop.f32.mrf.mxu0
      %v1453 = vadd.f32 %v1359, %v1452
      %v1454 = vpop.f32.mrf.mxu0
      %1455 = vmatprep.mubr.f32.mxu0 0.0
      %1456 = vmatmul.mubr.f32.gmra.mxu0 %v1336
      %v1457 = vpop.f32.mrf.mxu0
      %v1458 = vadd.f32 %v1359, %v1457
      %v1459 = vpop.f32.mrf.mxu0
      %1460 = vmatprep.mubr.f32.mxu0 0.0
      %1461 = vmatmul.mubr.f32.gmra.mxu0 %v1337
      %v1462 = vpop.f32.mrf.mxu0
      %v1463 = vadd.f32 %v1359, %v1462
      %v1464 = vpop.f32.mrf.mxu0
      %1465 = vdwg.mxu0
      %vm1466 = vcmask 15360
      %1467 = vst.msk [vmem:[%s442] sm:$0xff] %vm1466, %v1428
      %1468 = vst.msk [vmem:[%s442 + $0x8] sm:$0xff] %vm1466, %v1433
      %1469 = vst.msk [vmem:[%s442 + $0x10] sm:$0xff] %vm1466, %v1438
      %1470 = vst.msk [vmem:[%s442 + $0x18] sm:$0xff] %vm1466, %v1443
      %1471 = vst.msk [vmem:[%s442 + $0x20] sm:$0xff] %vm1466, %v1448
      %1472 = vst.msk [vmem:[%s442 + $0x28] sm:$0xff] %vm1466, %v1453
      %1473 = vst.msk [vmem:[%s442 + $0x30] sm:$0xff] %vm1466, %v1458
      %1474 = vst.msk [vmem:[%s442 + $0x38] sm:$0xff] %vm1466, %v1463
      %s1475 = smul.u32 8, %s24
      %p1476 = scmp.lt.s32.totalorder %s1475, 31
      %s1477 = scalar_select %p1476, %s1475, 31
      %s1478 = smul.addr %s1477, 8
      %s1479 = scalar_lea.vmem %s13, %s1478
      // Predicated region
      $region73: #{modified_mlp_forward.1} parent=71 // pred_check
        %p1480 = pneg %p320
      $region74: #{modified_mlp_forward.1} parent=71 // pred_check_branch
        %1482 = sbr.rel (%p1480) target = $region76
      $region75: #{modified_mlp_forward.1} parent=71 // pred_region
        %s1483 = smul.u32 8, %s24
      $region76: #{modified_mlp_forward.1} parent=71 // pred_fallthru
        _
    $region72: #{modified_mlp_forward.1} parent=5 // pred_fallthru
      _
    %p1484 = scmp.le.s32.totalorder 2, %s19
    // Predicated region
    $region77: #{modified_mlp_forward.1} parent=5 // pred_check
      %p1485 = pneg %p1484
    $region78: #{modified_mlp_forward.1} parent=5 // pred_check_branch
      %1487 = sbr.rel (%p1485) target = $region80
    $region79: #{modified_mlp_forward.1} parent=5 // pred_region
      %s1488 = ssub.s32 %s19, 2
      // Predicated region
      $region81: #{modified_mlp_forward.1} parent=79 // pred_check
        %p1489 = pneg %p326
      $region82: #{modified_mlp_forward.1} parent=79 // pred_check_branch
        %1491 = sbr.rel (%p1489) target = $region84
      $region83: #{modified_mlp_forward.1} parent=79 // pred_region
        %s1492 = smul.u32 8, %s25
        %p1493 = scmp.lt.s32.totalorder %s1492, 31
        %s1494 = scalar_select %p1493, %s1492, 31
        %s1495 = smul.addr %s1494, 8
        %s1496 = scalar_lea.vmem %s13, %s1495
      $region84: #{modified_mlp_forward.1} parent=79 // pred_fallthru
        _
    $region80: #{modified_mlp_forward.1} parent=5 // pred_fallthru
      _
  $region6: #{modified_mlp_forward.1} parent=0 // loop_footer
    %s23 = sadd.s32 1, %s19
  $region7: #{modified_mlp_forward.1} parent=0 // loop_footer_branch
    %18 = sbr.rel target = $region3
  $region8: #{modified_mlp_forward.1} parent=0 // loop_exit
    _

</llo_original>
